<compile_context>
chip_gen: v5e
topology: v5e:2x2
jax: 0.10.0
libtpu: 0.0.40
codegen_flags: <defaults>
</compile_context>

<pallas_src>
import functools

import jax
import jax.numpy as jnp
from jax import lax
from jax.experimental import pallas as pl
from jax.experimental.pallas import tpu as pltpu

EPS = 1e-5
CAND_LANES = 128          # lane-padded width of the running top-k candidate buffers
MERGE_CHUNK = 512         # lanes processed per online-top-k merge step
NEG_INF = float("-inf")
INT_MAX = 2147483647


def _round_up(x, m):
    return (x + m - 1) // m * m


def _cdiv(a, b):
    return -(-a // b)


def _tpu_vmem_bytes():
    try:
        return int(pltpu.get_tpu_info().vmem_capacity_bytes)
    except Exception:
        return 64 * 1024 * 1024       # conservative (v7x-sized) fallback


def _bn_relu(h, gamma, beta, row_valid, inv_count):
    """Training-mode BatchNorm1d + ReLU, affine folded to scale/shift.

    Batch statistics are computed over the real (unpadded) rows only."""
    hm = jnp.where(row_valid, h, 0.0)
    mean = jnp.sum(hm, axis=0, keepdims=True) * inv_count
    d = jnp.where(row_valid, h - mean, 0.0)
    var = jnp.sum(d * d, axis=0, keepdims=True) * inv_count
    scale = lax.rsqrt(var + EPS) * gamma
    shift = beta - mean * scale
    return jnp.maximum(h * scale + shift, 0.0)


def _mapping_kernel(x_ref, w1_ref, b1_ref, g1_ref, be1_ref,
                    w2_ref, b2_ref, g2_ref, be2_ref,
                    w3_ref, b3_ref,
                    out_v_ref, out_i_ref,
                    h_ref, thr_ref,
                    *, seq_len, tile_v, chunk, num_chunks,
                    tiles_per_split, batch_real):
    s = pl.program_id(0)      # vocab split (one per TensorCore on v7x)
    j = pl.program_id(1)      # vocab tile within the split (carries top-k state)
    b_pad = h_ref.shape[0]

    # ---- per-split init: small MLP head + running top-k state (lives in outputs) ----
    @pl.when(j == 0)
    def _init():
        rows = lax.broadcasted_iota(jnp.int32, (b_pad, 1), 0)
        row_valid = rows < batch_real
        inv_count = 1.0 / float(batch_real)

        h = jnp.dot(x_ref[...], w1_ref[...],
                    preferred_element_type=jnp.float32) + b1_ref[...]
        h = _bn_relu(h, g1_ref[...], be1_ref[...], row_valid, inv_count)
        h = jnp.dot(h, w2_ref[...],
                    preferred_element_type=jnp.float32) + b2_ref[...]
        h = _bn_relu(h, g2_ref[...], be2_ref[...], row_valid, inv_count)
        h_ref[...] = h.astype(jnp.bfloat16)        # bf16 lhs for the fc3 MXU pass

        out_v_ref[...] = jnp.full(out_v_ref.shape, NEG_INF, jnp.float32)
        out_i_ref[...] = jnp.zeros(out_i_ref.shape, jnp.int32)
        thr_ref[...] = jnp.full(thr_ref.shape, NEG_INF, jnp.float32)

    tile_base = (s * tiles_per_split + j) * tile_v    # global vocab offset of tile
    lane_cand = lax.broadcasted_iota(jnp.int32, (b_pad, CAND_LANES), 1)
    lane_chunk = lax.broadcasted_iota(jnp.int32, (b_pad, chunk), 1)

    @pl.loop(0, num_chunks)
    def _per_chunk(c):
        # fc3 on one merge-width chunk: bf16 x bf16 MXU matmul, f32 accumulate.
        # Padded vocab lanes carry a -inf bias, so no explicit mask is needed.
        logits = jnp.dot(h_ref[...], w3_ref[c],
                         preferred_element_type=jnp.float32) + b3_ref[c]
        gidx = lane_chunk + (tile_base + c * chunk)   # global vocab id per lane

        # cheap skip test: can this chunk improve any row's current top-k?
        row_max = jnp.max(logits, axis=-1, keepdims=True)
        improving = jnp.max(jnp.where(row_max > thr_ref[...], 1.0, 0.0)) > 0.0

        @pl.when(improving)
        def _merge():
            # Merge running candidates with this chunk.  Indices are globally
            # unique, so masking by index removes exactly the selected element.
            comb_v = jnp.concatenate([out_v_ref[0], logits], axis=-1)
            comb_i = jnp.concatenate([out_i_ref[0], gidx], axis=-1)

            def body(t, carry):
                comb_v, comb_i, new_v, new_i, kth = carry
                maxv = jnp.max(comb_v, axis=-1, keepdims=True)
                sel = comb_v == maxv
                idx = jnp.min(jnp.where(sel, comb_i, INT_MAX),
                              axis=-1, keepdims=True)
                new_v = jnp.where(lane_cand == t, maxv, new_v)
                new_i = jnp.where(lane_cand == t, idx, new_i)
                kth = jnp.where(t == seq_len - 1, maxv, kth)
                comb_v = jnp.where(comb_i == idx, NEG_INF, comb_v)
                return comb_v, comb_i, new_v, new_i, kth

            init = (comb_v, comb_i,
                    jnp.full((b_pad, CAND_LANES), NEG_INF, jnp.float32),
                    jnp.zeros((b_pad, CAND_LANES), jnp.int32),
                    jnp.full((b_pad, 1), NEG_INF, jnp.float32))
            _, _, new_v, new_i, kth = lax.fori_loop(0, seq_len, body, init,
                                                    unroll=True)
            # one full-width store each (no per-lane masked stores)
            out_v_ref[0] = new_v
            out_i_ref[0] = new_i
            thr_ref[...] = kth


def prepare_mapping_params(params, seq_len, *, tile_v=None, num_splits=None):
    """One-time, per-model preparation (keep OUT of the per-step forward):
    bf16-cast + chunk-contiguous layout of the streamed fc3 weight, -inf-padded
    fc3 bias, and the static tiling config (per-chip via get_tpu_info)."""
    (w1, b1, g1, be1, w2, b2, g2, be2, w3, b3) = params
    hidden, vocab = w3.shape
    assert 1 <= seq_len <= CAND_LANES and seq_len <= vocab

    vmem = _tpu_vmem_bytes()
    small_vmem = vmem <= 80 * 1024 * 1024          # v7x-class part (64 MiB VMEM)
    if num_splits is None:
        num_splits = 2 if small_vmem else 1        # v7x: one vocab range per TensorCore
    if tile_v is None:
        tile_v = 4096 if small_vmem else 8192      # sized for 2x/3x-buffered bf16 tiles

    def _layout(ns):
        per_split = _cdiv(vocab, ns)
        tv = min(tile_v, _round_up(per_split, 128))
        ck = min(MERGE_CHUNK, tv)
        tv = _round_up(tv, ck)
        tps = _cdiv(per_split, tv)
        return tv, ck, tps, tps * tv

    tv, ck, tps, per_split_pad = _layout(num_splits)
    if (num_splits - 1) * per_split_pad + seq_len > vocab:
        num_splits = 1                             # vocab too small to split safely
        tv, ck, tps, per_split_pad = _layout(num_splits)

    vocab_pad = num_splits * per_split_pad
    num_chunks = tv // ck
    chunks_total = vocab_pad // ck

    # fc3 weight: bf16, chunk-contiguous (chunks_total, hidden, chunk) so each
    # streamed tile is one long contiguous HBM burst.  Padded vocab columns get a
    # -inf bias so the kernel never needs an explicit vocab mask.
    w3p = jnp.pad(w3, ((0, 0), (0, vocab_pad - vocab))).astype(jnp.bfloat16)
    w3p = w3p.reshape(hidden, chunks_total, ck).transpose(1, 0, 2)
    b3p = jnp.pad(b3.reshape(-1), (0, vocab_pad - vocab),
                  constant_values=NEG_INF).reshape(chunks_total, 1, ck)

    cfg = dict(seq_len=seq_len, vocab=vocab, hidden=hidden,
               input_size=w1.shape[0], num_splits=num_splits,
               tiles_per_split=tps, tile_v=tv, chunk=ck, num_chunks=num_chunks,
               vmem=vmem, small_vmem=small_vmem)
    return (w1, b1, g1, be1, w2, b2, g2, be2, w3p, b3p), cfg


def mapping_network_forward(x, prepared, *, interpret=False):
    """x: (batch, input_size) float32.  Returns (batch, seq_len) int32 token ids."""
    params, cfg = prepared
    (w1, b1, g1, be1, w2, b2, g2, be2, w3p, b3p) = params
    batch, input_size = x.shape
    assert input_size == cfg["input_size"]
    seq_len, hidden = cfg["seq_len"], cfg["hidden"]
    ns, tps = cfg["num_splits"], cfg["tiles_per_split"]
    tv, ck, nc = cfg["tile_v"], cfg["chunk"], cfg["num_chunks"]

    # pad the batch to the f32 sublane multiple; BN stats are masked in-kernel
    b_pad = max(_round_up(batch, 8), 8)
    if b_pad != batch:
        x = jnp.pad(x, ((0, b_pad - batch), (0, 0)))

    kernel = functools.partial(_mapping_kernel, seq_len=seq_len, tile_v=tv,
                               chunk=ck, num_chunks=nc, tiles_per_split=tps,
                               batch_real=batch)

    def const(shape):
        return pl.BlockSpec(shape, lambda s, j: (0,) * len(shape))

    # 3-deep pipelining for the streamed weight on v7x; plain double-buffering
    # elsewhere (DMA-bound, depth 2 is enough).
    depth = 3 if (cfg["small_vmem"] and tps > 2) else 2

    def streamed(shape, idx):
        if depth > 2:
            try:
                return pl.BlockSpec(shape, idx, pipeline_mode=pl.Buffered(depth))
            except TypeError:
                pass
        return pl.BlockSpec(shape, idx)

    grid_spec = pltpu.PrefetchScalarGridSpec(
        num_scalar_prefetch=0,
        grid=(ns, tps),
        in_specs=[
            const((b_pad, input_size)),                       # x
            const((input_size, hidden)),                      # w1
            const((1, hidden)),                               # b1
            const((1, hidden)),                               # bn1 gamma
            const((1, hidden)),                               # bn1 beta
            const((hidden, hidden)),                          # w2
            const((1, hidden)),                               # b2
            const((1, hidden)),                               # bn2 gamma
            const((1, hidden)),                               # bn2 beta
            streamed((nc, hidden, ck),                        # w3 (streamed, bf16)
                     lambda s, j: (s * tps + j, 0, 0)),
            streamed((nc, 1, ck),                             # b3 (streamed, -inf pad)
                     lambda s, j: (s * tps + j, 0, 0)),
        ],
        out_specs=[
            pl.BlockSpec((1, b_pad, CAND_LANES), lambda s, j: (s, 0, 0)),  # values
            pl.BlockSpec((1, b_pad, CAND_LANES), lambda s, j: (s, 0, 0)),  # indices
        ],
        scratch_shapes=[
            pltpu.VMEM((b_pad, hidden), jnp.bfloat16),        # h (fc3 lhs)
            pltpu.VMEM((b_pad, 1), jnp.float32),              # running k-th-best
        ],
    )

    # VMEM budget from the actual footprint (streamed tiles x depth + constants),
    # clamped to the detected per-chip capacity.
    w3_tile = nc * hidden * ck * 2
    b3_tile = nc * ck * 4
    const_b = (b_pad * input_size + input_size * hidden
               + hidden * hidden + 6 * hidden) * 4
    out_b = 2 * b_pad * CAND_LANES * 4
    scratch_b = b_pad * hidden * 2 + b_pad * 4
    est = depth * (w3_tile + b3_tile) + 2 * (const_b + out_b) + scratch_b
    vmem_limit = int(min(int(cfg["vmem"] * 0.9),
                         max(est + (16 << 20), 32 << 20)))

    out_v, out_i = pl.pallas_call(
        kernel,
        out_shape=(jax.ShapeDtypeStruct((ns, b_pad, CAND_LANES), jnp.float32),
                   jax.ShapeDtypeStruct((ns, b_pad, CAND_LANES), jnp.int32)),
        grid_spec=grid_spec,
        compiler_params=pltpu.CompilerParams(
            dimension_semantics=("parallel", "arbitrary"),
            vmem_limit_bytes=vmem_limit),
        interpret=interpret,
    )(x, w1, b1, g1, be1, w2, b2, g2, be2, w3p, b3p)

    if ns == 1:
        return out_i[0, :batch, :seq_len]
    # tiny cross-split combine (ns*seq_len lanes per row); splits are disjoint
    # vocab ranges so indices stay unique.
    vals = out_v[:, :batch, :seq_len].transpose(1, 0, 2).reshape(batch, ns * seq_len)
    idxs = out_i[:, :batch, :seq_len].transpose(1, 0, 2).reshape(batch, ns * seq_len)
    _, pos = lax.top_k(vals, seq_len)
    return jnp.take_along_axis(idxs, pos, axis=-1)


def init_params(key, input_size, hidden_size, vocab_size):
    """Parameter init mirroring the PyTorch module's shapes.

    Linear weights stored as (in, out) (transposed vs torch's (out, in));
    biases / BN params stored as (1, features) rows."""
    def linear(k, fan_in, fan_out):
        kw, kb = jax.random.split(k)
        bound = 1.0 / jnp.sqrt(fan_in)
        w = jax.random.uniform(kw, (fan_in, fan_out), jnp.float32, -bound, bound)
        b = jax.random.uniform(kb, (1, fan_out), jnp.float32, -bound, bound)
        return w, b

    k1, k2, k3 = jax.random.split(key, 3)
    w1, b1 = linear(k1, input_size, hidden_size)
    w2, b2 = linear(k2, hidden_size, hidden_size)
    w3, b3 = linear(k3, hidden_size, vocab_size)
    g1 = jnp.ones((1, hidden_size), jnp.float32)
    be1 = jnp.zeros((1, hidden_size), jnp.float32)
    g2 = jnp.ones((1, hidden_size), jnp.float32)
    be2 = jnp.zeros((1, hidden_size), jnp.float32)
    return (w1, b1, g1, be1, w2, b2, g2, be2, w3, b3)


if __name__ == "__main__":
    import numpy as np

    # Small, forward-consistent shapes: x is (batch, input_size) image-CLS features.
    batch = 4
    input_size = 16
    hidden_size = 32
    vocab_size = 256     # scaled-down vocabulary (default 50257)
    seq_len = 8          # scaled-down prefix length (default 20)

    key = jax.random.PRNGKey(0)
    kx, kp = jax.random.split(key)
    x = jax.random.normal(kx, (batch, input_size), jnp.float32)
    params = init_params(kp, input_size, hidden_size, vocab_size)

    # one-time prep (bf16 / chunk-contiguous fc3, per-chip tiling config)
    prepared = prepare_mapping_params(params, seq_len)

    top_indices = mapping_network_forward(x, prepared)
    jax.block_until_ready(top_indices)

    assert top_indices.shape == (batch, seq_len)
    assert top_indices.dtype == jnp.int32

    ti = np.asarray(top_indices)
    assert (ti >= 0).all() and (ti < vocab_size).all()
    assert all(len(set(row.tolist())) == seq_len for row in ti)

    # Reference check (same bf16 fc3 dtype path as the kernel): the logits of the
    # indices the kernel picked must match the true top-k logit values.
    def ref_logits(xv, ps):
        w1, b1, g1, be1, w2, b2, g2, be2, w3, b3 = ps
        def bn_relu(h, g, b):
            m = h.mean(0, keepdims=True)
            v = ((h - m) ** 2).mean(0, keepdims=True)
            return jnp.maximum((h - m) * lax.rsqrt(v + EPS) * g + b, 0.0)
        hi = lax.Precision.HIGHEST
        h = bn_relu(jnp.dot(xv, w1, precision=hi) + b1, g1, be1)
        h = bn_relu(jnp.dot(h, w2, precision=hi) + b2, g2, be2)
        return jnp.dot(h.astype(jnp.bfloat16), w3.astype(jnp.bfloat16),
                       preferred_element_type=jnp.float32) + b3

    lr = np.asarray(ref_logits(x, params))
    topk_ref = -np.sort(-lr, axis=-1)[:, :seq_len]
    picked = -np.sort(-np.take_along_axis(lr, ti, axis=-1), axis=-1)
    np.testing.assert_allclose(picked, topk_ref, rtol=0, atol=5e-3)

    print("KERNEL_OK")
</pallas_src>

<mosaic_0001>
module attributes {stable_mosaic.version = 11 : i64} {
  func.func @_mapping_kernel(%arg0: i32, %arg1: i32, %arg2: memref<8x16xf32, #tpu.memory_space<vmem>>, %arg3: memref<16x32xf32, #tpu.memory_space<vmem>>, %arg4: memref<1x32xf32, #tpu.memory_space<vmem>>, %arg5: memref<1x32xf32, #tpu.memory_space<vmem>>, %arg6: memref<1x32xf32, #tpu.memory_space<vmem>>, %arg7: memref<32x32xf32, #tpu.memory_space<vmem>>, %arg8: memref<1x32xf32, #tpu.memory_space<vmem>>, %arg9: memref<1x32xf32, #tpu.memory_space<vmem>>, %arg10: memref<1x32xf32, #tpu.memory_space<vmem>>, %arg11: memref<1x32x128xbf16, #tpu.memory_space<vmem>>, %arg12: memref<1x1x128xf32, #tpu.memory_space<vmem>>, %arg13: memref<1x8x128xf32, #tpu.memory_space<vmem>>, %arg14: memref<1x8x128xi32, #tpu.memory_space<vmem>>, %arg15: memref<8x32xbf16, #tpu.memory_space<vmem>>, %arg16: memref<8x1xf32, #tpu.memory_space<vmem>>) attributes {dimension_semantics = [#tpu.dimension_semantics<parallel>, #tpu.dimension_semantics<arbitrary>], iteration_bounds = array<i64: 2, 1>, scalar_prefetch = 0 : i64, scratch_operands = 2 : i64, tpu.core_type = #tpu.core_type<tc>, window_params = [{pipeline_mode = #tpu.pipeline_mode<synchronous>, transform_indices = @transform_0, window_bounds = array<i64: 8, 16>}, {pipeline_mode = #tpu.pipeline_mode<synchronous>, transform_indices = @transform_1, window_bounds = array<i64: 16, 32>}, {pipeline_mode = #tpu.pipeline_mode<synchronous>, transform_indices = @transform_2, window_bounds = array<i64: 1, 32>}, {pipeline_mode = #tpu.pipeline_mode<synchronous>, transform_indices = @transform_3, window_bounds = array<i64: 1, 32>}, {pipeline_mode = #tpu.pipeline_mode<synchronous>, transform_indices = @transform_4, window_bounds = array<i64: 1, 32>}, {pipeline_mode = #tpu.pipeline_mode<synchronous>, transform_indices = @transform_5, window_bounds = array<i64: 32, 32>}, {pipeline_mode = #tpu.pipeline_mode<synchronous>, transform_indices = @transform_6, window_bounds = array<i64: 1, 32>}, {pipeline_mode = #tpu.pipeline_mode<synchronous>, transform_indices = @transform_7, window_bounds = array<i64: 1, 32>}, {pipeline_mode = #tpu.pipeline_mode<synchronous>, transform_indices = @transform_8, window_bounds = array<i64: 1, 32>}, {transform_indices = @transform_9, window_bounds = array<i64: 1, 32, 128>}, {transform_indices = @transform_10, window_bounds = array<i64: 1, 1, 128>}, {transform_indices = @transform_11, window_bounds = array<i64: 1, 8, 128>}, {transform_indices = @transform_12, window_bounds = array<i64: 1, 8, 128>}]} {
    %c0_i32 = arith.constant 0 : i32
    %0 = arith.cmpi eq, %arg1, %c0_i32 : i32
    %1 = arith.extui %0 : i1 to i32
    %c0_i32_0 = arith.constant 0 : i32
    %2 = arith.cmpi ne, %1, %c0_i32_0 : i32
    scf.if %2 {
      %38 = tpu.iota {dimensions = array<i32: 0>} : vector<8x1xi32>
      %c4_i32 = arith.constant 4 : i32
      %39 = vector.broadcast %c4_i32 : i32 to vector<8x1xi32>
      %40 = arith.cmpi slt, %38, %39 : vector<8x1xi32>
      %c0_19 = arith.constant 0 : index
      %c0_20 = arith.constant 0 : index
      %41 = vector.load %arg2[%c0_19, %c0_20] : memref<8x16xf32, #tpu.memory_space<vmem>>, vector<8x16xf32>
      %c0_21 = arith.constant 0 : index
      %c0_22 = arith.constant 0 : index
      %42 = vector.load %arg3[%c0_21, %c0_22] : memref<16x32xf32, #tpu.memory_space<vmem>>, vector<16x32xf32>
      %cst_23 = arith.constant dense<0.000000e+00> : vector<8x32xf32>
      %43 = tpu.matmul %41, %42, %cst_23 {dimension_numbers = #tpu.dot_dimension_numbers<[1], [0], [0], [1], [0, 0, 1, 1], [], []>} : vector<8x16xf32>, vector<16x32xf32>, vector<8x32xf32> -> vector<8x32xf32>
      %c0_24 = arith.constant 0 : index
      %c0_25 = arith.constant 0 : index
      %44 = vector.load %arg4[%c0_24, %c0_25] : memref<1x32xf32, #tpu.memory_space<vmem>>, vector<1x32xf32>
      %45 = vector.broadcast %44 : vector<1x32xf32> to vector<8x32xf32>
      %46 = arith.addf %43, %45 : vector<8x32xf32>
      %c0_26 = arith.constant 0 : index
      %c0_27 = arith.constant 0 : index
      %47 = vector.load %arg5[%c0_26, %c0_27] : memref<1x32xf32, #tpu.memory_space<vmem>>, vector<1x32xf32>
      %c0_28 = arith.constant 0 : index
      %c0_29 = arith.constant 0 : index
      %48 = vector.load %arg6[%c0_28, %c0_29] : memref<1x32xf32, #tpu.memory_space<vmem>>, vector<1x32xf32>
      %cst_30 = arith.constant 0.000000e+00 : f32
      %49 = vector.shape_cast %40 : vector<8x1xi1> to vector<8x1xi1>
      %50 = vector.broadcast %49 : vector<8x1xi1> to vector<8x32xi1>
      %51 = vector.broadcast %cst_30 : f32 to vector<8x32xf32>
      %52 = arith.select %50, %46, %51 : vector<8x32xi1>, vector<8x32xf32>
      %cst_31 = arith.constant dense<0.000000e+00> : vector<32xf32>
      %53 = vector.multi_reduction <add>, %52, %cst_31 [0] : vector<8x32xf32> to vector<32xf32>
      %54 = vector.shape_cast %53 : vector<32xf32> to vector<1x32xf32>
      %cst_32 = arith.constant 2.500000e-01 : f32
      %55 = vector.broadcast %cst_32 : f32 to vector<1x32xf32>
      %56 = arith.mulf %54, %55 : vector<1x32xf32>
      %57 = vector.broadcast %56 : vector<1x32xf32> to vector<8x32xf32>
      %58 = arith.subf %46, %57 : vector<8x32xf32>
      %cst_33 = arith.constant 0.000000e+00 : f32
      %59 = vector.shape_cast %40 : vector<8x1xi1> to vector<8x1xi1>
      %60 = vector.broadcast %59 : vector<8x1xi1> to vector<8x32xi1>
      %61 = vector.broadcast %cst_33 : f32 to vector<8x32xf32>
      %62 = arith.select %60, %58, %61 : vector<8x32xi1>, vector<8x32xf32>
      %63 = arith.mulf %62, %62 : vector<8x32xf32>
      %cst_34 = arith.constant dense<0.000000e+00> : vector<32xf32>
      %64 = vector.multi_reduction <add>, %63, %cst_34 [0] : vector<8x32xf32> to vector<32xf32>
      %65 = vector.shape_cast %64 : vector<32xf32> to vector<1x32xf32>
      %cst_35 = arith.constant 2.500000e-01 : f32
      %66 = vector.broadcast %cst_35 : f32 to vector<1x32xf32>
      %67 = arith.mulf %65, %66 : vector<1x32xf32>
      %cst_36 = arith.constant 9.99999974E-6 : f32
      %68 = vector.broadcast %cst_36 : f32 to vector<1x32xf32>
      %69 = arith.addf %67, %68 : vector<1x32xf32>
      %70 = math.rsqrt %69 : vector<1x32xf32>
      %71 = arith.mulf %70, %47 : vector<1x32xf32>
      %72 = arith.mulf %56, %71 : vector<1x32xf32>
      %73 = arith.subf %48, %72 : vector<1x32xf32>
      %74 = vector.broadcast %71 : vector<1x32xf32> to vector<8x32xf32>
      %75 = arith.mulf %46, %74 : vector<8x32xf32>
      %76 = vector.broadcast %73 : vector<1x32xf32> to vector<8x32xf32>
      %77 = arith.addf %75, %76 : vector<8x32xf32>
      %cst_37 = arith.constant 0.000000e+00 : f32
      %78 = vector.broadcast %cst_37 : f32 to vector<8x32xf32>
      %79 = arith.maximumf %77, %78 : vector<8x32xf32>
      %c0_38 = arith.constant 0 : index
      %c0_39 = arith.constant 0 : index
      %80 = vector.load %arg7[%c0_38, %c0_39] : memref<32x32xf32, #tpu.memory_space<vmem>>, vector<32x32xf32>
      %cst_40 = arith.constant dense<0.000000e+00> : vector<8x32xf32>
      %81 = tpu.matmul %79, %80, %cst_40 {dimension_numbers = #tpu.dot_dimension_numbers<[1], [0], [0], [1], [0, 0, 1, 1], [], []>} : vector<8x32xf32>, vector<32x32xf32>, vector<8x32xf32> -> vector<8x32xf32>
      %c0_41 = arith.constant 0 : index
      %c0_42 = arith.constant 0 : index
      %82 = vector.load %arg8[%c0_41, %c0_42] : memref<1x32xf32, #tpu.memory_space<vmem>>, vector<1x32xf32>
      %83 = vector.broadcast %82 : vector<1x32xf32> to vector<8x32xf32>
      %84 = arith.addf %81, %83 : vector<8x32xf32>
      %c0_43 = arith.constant 0 : index
      %c0_44 = arith.constant 0 : index
      %85 = vector.load %arg9[%c0_43, %c0_44] : memref<1x32xf32, #tpu.memory_space<vmem>>, vector<1x32xf32>
      %c0_45 = arith.constant 0 : index
      %c0_46 = arith.constant 0 : index
      %86 = vector.load %arg10[%c0_45, %c0_46] : memref<1x32xf32, #tpu.memory_space<vmem>>, vector<1x32xf32>
      %cst_47 = arith.constant 0.000000e+00 : f32
      %87 = vector.shape_cast %40 : vector<8x1xi1> to vector<8x1xi1>
      %88 = vector.broadcast %87 : vector<8x1xi1> to vector<8x32xi1>
      %89 = vector.broadcast %cst_47 : f32 to vector<8x32xf32>
      %90 = arith.select %88, %84, %89 : vector<8x32xi1>, vector<8x32xf32>
      %cst_48 = arith.constant dense<0.000000e+00> : vector<32xf32>
      %91 = vector.multi_reduction <add>, %90, %cst_48 [0] : vector<8x32xf32> to vector<32xf32>
      %92 = vector.shape_cast %91 : vector<32xf32> to vector<1x32xf32>
      %cst_49 = arith.constant 2.500000e-01 : f32
      %93 = vector.broadcast %cst_49 : f32 to vector<1x32xf32>
      %94 = arith.mulf %92, %93 : vector<1x32xf32>
      %95 = vector.broadcast %94 : vector<1x32xf32> to vector<8x32xf32>
      %96 = arith.subf %84, %95 : vector<8x32xf32>
      %cst_50 = arith.constant 0.000000e+00 : f32
      %97 = vector.shape_cast %40 : vector<8x1xi1> to vector<8x1xi1>
      %98 = vector.broadcast %97 : vector<8x1xi1> to vector<8x32xi1>
      %99 = vector.broadcast %cst_50 : f32 to vector<8x32xf32>
      %100 = arith.select %98, %96, %99 : vector<8x32xi1>, vector<8x32xf32>
      %101 = arith.mulf %100, %100 : vector<8x32xf32>
      %cst_51 = arith.constant dense<0.000000e+00> : vector<32xf32>
      %102 = vector.multi_reduction <add>, %101, %cst_51 [0] : vector<8x32xf32> to vector<32xf32>
      %103 = vector.shape_cast %102 : vector<32xf32> to vector<1x32xf32>
      %cst_52 = arith.constant 2.500000e-01 : f32
      %104 = vector.broadcast %cst_52 : f32 to vector<1x32xf32>
      %105 = arith.mulf %103, %104 : vector<1x32xf32>
      %cst_53 = arith.constant 9.99999974E-6 : f32
      %106 = vector.broadcast %cst_53 : f32 to vector<1x32xf32>
      %107 = arith.addf %105, %106 : vector<1x32xf32>
      %108 = math.rsqrt %107 : vector<1x32xf32>
      %109 = arith.mulf %108, %85 : vector<1x32xf32>
      %110 = arith.mulf %94, %109 : vector<1x32xf32>
      %111 = arith.subf %86, %110 : vector<1x32xf32>
      %112 = vector.broadcast %109 : vector<1x32xf32> to vector<8x32xf32>
      %113 = arith.mulf %84, %112 : vector<8x32xf32>
      %114 = vector.broadcast %111 : vector<1x32xf32> to vector<8x32xf32>
      %115 = arith.addf %113, %114 : vector<8x32xf32>
      %cst_54 = arith.constant 0.000000e+00 : f32
      %116 = vector.broadcast %cst_54 : f32 to vector<8x32xf32>
      %117 = arith.maximumf %115, %116 : vector<8x32xf32>
      %118 = arith.truncf %117 : vector<8x32xf32> to vector<8x32xbf16>
      %c0_55 = arith.constant 0 : index
      %c0_56 = arith.constant 0 : index
      %119 = vector.load %arg15[%c0_55, %c0_56] : memref<8x32xbf16, #tpu.memory_space<vmem>>, vector<8x32xbf16>
      tpu.vector_store %arg15[%c0_55, %c0_56], %118 {strides = array<i32>} : memref<8x32xbf16, #tpu.memory_space<vmem>>, vector<8x32xbf16>,
      %cst_57 = arith.constant 0xFF800000 : f32
      %120 = vector.broadcast %cst_57 : f32 to vector<1x8x128xf32>
      %c0_58 = arith.constant 0 : index
      %c0_59 = arith.constant 0 : index
      %c0_60 = arith.constant 0 : index
      %121 = vector.load %arg13[%c0_58, %c0_59, %c0_60] : memref<1x8x128xf32, #tpu.memory_space<vmem>>, vector<1x8x128xf32>
      tpu.vector_store %arg13[%c0_58, %c0_59, %c0_60], %120 {strides = array<i32>} : memref<1x8x128xf32, #tpu.memory_space<vmem>>, vector<1x8x128xf32>,
      %c0_i32_61 = arith.constant 0 : i32
      %122 = vector.broadcast %c0_i32_61 : i32 to vector<1x8x128xi32>
      %c0_62 = arith.constant 0 : index
      %c0_63 = arith.constant 0 : index
      %c0_64 = arith.constant 0 : index
      %123 = vector.load %arg14[%c0_62, %c0_63, %c0_64] : memref<1x8x128xi32, #tpu.memory_space<vmem>>, vector<1x8x128xi32>
      tpu.vector_store %arg14[%c0_62, %c0_63, %c0_64], %122 {strides = array<i32>} : memref<1x8x128xi32, #tpu.memory_space<vmem>>, vector<1x8x128xi32>,
      %cst_65 = arith.constant 0xFF800000 : f32
      %124 = vector.broadcast %cst_65 : f32 to vector<8x1xf32>
      %c0_66 = arith.constant 0 : index
      %c0_67 = arith.constant 0 : index
      %125 = vector.load %arg16[%c0_66, %c0_67] : memref<8x1xf32, #tpu.memory_space<vmem>>, vector<8x1xf32>
      tpu.vector_store %arg16[%c0_66, %c0_67], %124 {strides = array<i32>} : memref<8x1xf32, #tpu.memory_space<vmem>>, vector<8x1xf32>,
    } else {
    }
    %c1_i32 = arith.constant 1 : i32
    %3 = arith.muli %arg0, %c1_i32 : i32
    %4 = arith.addi %3, %arg1 : i32
    %c128_i32 = arith.constant 128 : i32
    %5 = arith.muli %4, %c128_i32 : i32
    %6 = tpu.iota {dimensions = array<i32: 1>} : vector<8x128xi32>
    %7 = tpu.iota {dimensions = array<i32: 1>} : vector<8x128xi32>
    %c0_i32_1 = arith.constant 0 : i32
    %c1_i32_2 = arith.constant 1 : i32
    %8 = arith.muli %c0_i32_1, %c1_i32_2 : i32
    %c0_i32_3 = arith.constant 0 : i32
    %9 = arith.addi %c0_i32_3, %8 : i32
    %c0 = arith.constant 0 : index
    %c0_4 = arith.constant 0 : index
    %10 = vector.load %arg15[%c0, %c0_4] : memref<8x32xbf16, #tpu.memory_space<vmem>>, vector<8x32xbf16>
    %11 = arith.index_cast %9 : i32 to index
    %c0_5 = arith.constant 0 : index
    %c0_6 = arith.constant 0 : index
    %12 = vector.load %arg11[%11, %c0_5, %c0_6] : memref<1x32x128xbf16, #tpu.memory_space<vmem>>, vector<1x32x128xbf16>
    %13 = vector.shape_cast %12 : vector<1x32x128xbf16> to vector<32x128xbf16>
    %cst = arith.constant dense<0.000000e+00> : vector<8x128xf32>
    %14 = tpu.matmul %10, %13, %cst {dimension_numbers = #tpu.dot_dimension_numbers<[1], [0], [0], [1], [0, 0, 1, 1], [], []>} : vector<8x32xbf16>, vector<32x128xbf16>, vector<8x128xf32> -> vector<8x128xf32>
    %15 = arith.index_cast %9 : i32 to index
    %c0_7 = arith.constant 0 : index
    %c0_8 = arith.constant 0 : index
    %16 = vector.load %arg12[%15, %c0_7, %c0_8] : memref<1x1x128xf32, #tpu.memory_space<vmem>>, vector<1x1x128xf32>
    %17 = vector.shape_cast %16 : vector<1x1x128xf32> to vector<1x128xf32>
    %18 = vector.broadcast %17 : vector<1x128xf32> to vector<8x128xf32>
    %19 = arith.addf %14, %18 : vector<8x128xf32>
    %c128_i32_9 = arith.constant 128 : i32
    %20 = arith.muli %9, %c128_i32_9 : i32
    %21 = arith.addi %5, %20 : i32
    %22 = vector.broadcast %21 : i32 to vector<8x128xi32>
    %23 = arith.addi %7, %22 : vector<8x128xi32>
    %cst_10 = arith.constant dense<0xFF800000> : vector<8xf32>
    %24 = vector.multi_reduction <maximumf>, %19, %cst_10 [1] : vector<8x128xf32> to vector<8xf32>
    %25 = vector.shape_cast %24 : vector<8xf32> to vector<8x1xf32>
    %c0_11 = arith.constant 0 : index
    %c0_12 = arith.constant 0 : index
    %26 = vector.load %arg16[%c0_11, %c0_12] : memref<8x1xf32, #tpu.memory_space<vmem>>, vector<8x1xf32>
    %27 = arith.cmpf ogt, %25, %26 : vector<8x1xf32>
    %cst_13 = arith.constant 1.000000e+00 : f32
    %cst_14 = arith.constant 0.000000e+00 : f32
    %28 = vector.broadcast %cst_13 : f32 to vector<8x1xf32>
    %29 = vector.broadcast %cst_14 : f32 to vector<8x1xf32>
    %30 = arith.select %27, %28, %29 : vector<8x1xi1>, vector<8x1xf32>
    %31 = vector.shape_cast %30 : vector<8x1xf32> to vector<1x8x1xf32>
    %cst_15 = arith.constant dense<0xFF800000> : vector<1xf32>
    %32 = vector.multi_reduction <maximumf>, %31, %cst_15 [1, 2] : vector<1x8x1xf32> to vector<1xf32>
    %33 = vector.shape_cast %32 : vector<1xf32> to vector<1x1x1xf32>
    %34 = vector.extract %33[0, 0, 0] : f32 from vector<1x1x1xf32>
    %cst_16 = arith.constant 0.000000e+00 : f32
    %35 = arith.cmpf ogt, %34, %cst_16 : f32
    %36 = arith.extui %35 : i1 to i32
    %c0_i32_17 = arith.constant 0 : i32
    %37 = arith.cmpi ne, %36, %c0_i32_17 : i32
    scf.if %37 {
      %c0_19 = arith.constant 0 : index
      %c0_20 = arith.constant 0 : index
      %c0_21 = arith.constant 0 : index
      %38 = vector.load %arg13[%c0_19, %c0_20, %c0_21] : memref<1x8x128xf32, #tpu.memory_space<vmem>>, vector<1x8x128xf32>
      %39 = vector.shape_cast %38 : vector<1x8x128xf32> to vector<8x128xf32>
      %40 = tpu.concatenate %39, %19 in 1 : vector<8x128xf32>, vector<8x128xf32> -> vector<8x256xf32>
      %c0_22 = arith.constant 0 : index
      %c0_23 = arith.constant 0 : index
      %c0_24 = arith.constant 0 : index
      %41 = vector.load %arg14[%c0_22, %c0_23, %c0_24] : memref<1x8x128xi32, #tpu.memory_space<vmem>>, vector<1x8x128xi32>
      %42 = vector.shape_cast %41 : vector<1x8x128xi32> to vector<8x128xi32>
      %43 = tpu.concatenate %42, %23 in 1 : vector<8x128xi32>, vector<8x128xi32> -> vector<8x256xi32>
      %cst_25 = arith.constant 0xFF800000 : f32
      %44 = vector.broadcast %cst_25 : f32 to vector<8x128xf32>
      %c0_i32_26 = arith.constant 0 : i32
      %45 = vector.broadcast %c0_i32_26 : i32 to vector<8x128xi32>
      %cst_27 = arith.constant 0xFF800000 : f32
      %46 = vector.broadcast %cst_27 : f32 to vector<8x1xf32>
      %c0_i32_28 = arith.constant 0 : i32
      %cst_29 = arith.constant dense<0xFF800000> : vector<8xf32>
      %47 = vector.multi_reduction <maximumf>, %40, %cst_29 [1] : vector<8x256xf32> to vector<8xf32>
      %48 = vector.shape_cast %47 : vector<8xf32> to vector<8x1xf32>
      %49 = vector.broadcast %48 : vector<8x1xf32> to vector<8x256xf32>
      %50 = arith.cmpf oeq, %40, %49 : vector<8x256xf32>
      %c2147483647_i32 = arith.constant 2147483647 : i32
      %51 = vector.broadcast %c2147483647_i32 : i32 to vector<8x256xi32>
      %52 = arith.select %50, %43, %51 : vector<8x256xi1>, vector<8x256xi32>
      %cst_30 = arith.constant dense<2147483647> : vector<8xi32>
      %53 = vector.multi_reduction <minsi>, %52, %cst_30 [1] : vector<8x256xi32> to vector<8xi32>
      %54 = vector.shape_cast %53 : vector<8xi32> to vector<8x1xi32>
      %55 = vector.broadcast %c0_i32_28 : i32 to vector<8x128xi32>
      %56 = arith.cmpi eq, %6, %55 : vector<8x128xi32>
      %57 = vector.shape_cast %48 : vector<8x1xf32> to vector<8x1xf32>
      %58 = vector.broadcast %57 : vector<8x1xf32> to vector<8x128xf32>
      %59 = arith.select %56, %58, %44 : vector<8x128xi1>, vector<8x128xf32>
      %60 = vector.broadcast %c0_i32_28 : i32 to vector<8x128xi32>
      %61 = arith.cmpi eq, %6, %60 : vector<8x128xi32>
      %62 = vector.shape_cast %54 : vector<8x1xi32> to vector<8x1xi32>
      %63 = vector.broadcast %62 : vector<8x1xi32> to vector<8x128xi32>
      %64 = arith.select %61, %63, %45 : vector<8x128xi1>, vector<8x128xi32>
      %c7_i32 = arith.constant 7 : i32
      %65 = arith.cmpi eq, %c0_i32_28, %c7_i32 : i32
      %66 = arith.select %65, %48, %46 : vector<8x1xf32>
      %67 = vector.broadcast %54 : vector<8x1xi32> to vector<8x256xi32>
      %68 = arith.cmpi eq, %43, %67 : vector<8x256xi32>
      %cst_31 = arith.constant 0xFF800000 : f32
      %69 = vector.broadcast %cst_31 : f32 to vector<8x256xf32>
      %70 = arith.select %68, %69, %40 : vector<8x256xi1>, vector<8x256xf32>
      %c1_i32_32 = arith.constant 1 : i32
      %cst_33 = arith.constant dense<0xFF800000> : vector<8xf32>
      %71 = vector.multi_reduction <maximumf>, %70, %cst_33 [1] : vector<8x256xf32> to vector<8xf32>
      %72 = vector.shape_cast %71 : vector<8xf32> to vector<8x1xf32>
      %73 = vector.broadcast %72 : vector<8x1xf32> to vector<8x256xf32>
      %74 = arith.cmpf oeq, %70, %73 : vector<8x256xf32>
      %c2147483647_i32_34 = arith.constant 2147483647 : i32
      %75 = vector.broadcast %c2147483647_i32_34 : i32 to vector<8x256xi32>
      %76 = arith.select %74, %43, %75 : vector<8x256xi1>, vector<8x256xi32>
      %cst_35 = arith.constant dense<2147483647> : vector<8xi32>
      %77 = vector.multi_reduction <minsi>, %76, %cst_35 [1] : vector<8x256xi32> to vector<8xi32>
      %78 = vector.shape_cast %77 : vector<8xi32> to vector<8x1xi32>
      %79 = vector.broadcast %c1_i32_32 : i32 to vector<8x128xi32>
      %80 = arith.cmpi eq, %6, %79 : vector<8x128xi32>
      %81 = vector.shape_cast %72 : vector<8x1xf32> to vector<8x1xf32>
      %82 = vector.broadcast %81 : vector<8x1xf32> to vector<8x128xf32>
      %83 = arith.select %80, %82, %59 : vector<8x128xi1>, vector<8x128xf32>
      %84 = vector.broadcast %c1_i32_32 : i32 to vector<8x128xi32>
      %85 = arith.cmpi eq, %6, %84 : vector<8x128xi32>
      %86 = vector.shape_cast %78 : vector<8x1xi32> to vector<8x1xi32>
      %87 = vector.broadcast %86 : vector<8x1xi32> to vector<8x128xi32>
      %88 = arith.select %85, %87, %64 : vector<8x128xi1>, vector<8x128xi32>
      %c7_i32_36 = arith.constant 7 : i32
      %89 = arith.cmpi eq, %c1_i32_32, %c7_i32_36 : i32
      %90 = arith.select %89, %72, %66 : vector<8x1xf32>
      %91 = vector.broadcast %78 : vector<8x1xi32> to vector<8x256xi32>
      %92 = arith.cmpi eq, %43, %91 : vector<8x256xi32>
      %cst_37 = arith.constant 0xFF800000 : f32
      %93 = vector.broadcast %cst_37 : f32 to vector<8x256xf32>
      %94 = arith.select %92, %93, %70 : vector<8x256xi1>, vector<8x256xf32>
      %c2_i32 = arith.constant 2 : i32
      %cst_38 = arith.constant dense<0xFF800000> : vector<8xf32>
      %95 = vector.multi_reduction <maximumf>, %94, %cst_38 [1] : vector<8x256xf32> to vector<8xf32>
      %96 = vector.shape_cast %95 : vector<8xf32> to vector<8x1xf32>
      %97 = vector.broadcast %96 : vector<8x1xf32> to vector<8x256xf32>
      %98 = arith.cmpf oeq, %94, %97 : vector<8x256xf32>
      %c2147483647_i32_39 = arith.constant 2147483647 : i32
      %99 = vector.broadcast %c2147483647_i32_39 : i32 to vector<8x256xi32>
      %100 = arith.select %98, %43, %99 : vector<8x256xi1>, vector<8x256xi32>
      %cst_40 = arith.constant dense<2147483647> : vector<8xi32>
      %101 = vector.multi_reduction <minsi>, %100, %cst_40 [1] : vector<8x256xi32> to vector<8xi32>
      %102 = vector.shape_cast %101 : vector<8xi32> to vector<8x1xi32>
      %103 = vector.broadcast %c2_i32 : i32 to vector<8x128xi32>
      %104 = arith.cmpi eq, %6, %103 : vector<8x128xi32>
      %105 = vector.shape_cast %96 : vector<8x1xf32> to vector<8x1xf32>
      %106 = vector.broadcast %105 : vector<8x1xf32> to vector<8x128xf32>
      %107 = arith.select %104, %106, %83 : vector<8x128xi1>, vector<8x128xf32>
      %108 = vector.broadcast %c2_i32 : i32 to vector<8x128xi32>
      %109 = arith.cmpi eq, %6, %108 : vector<8x128xi32>
      %110 = vector.shape_cast %102 : vector<8x1xi32> to vector<8x1xi32>
      %111 = vector.broadcast %110 : vector<8x1xi32> to vector<8x128xi32>
      %112 = arith.select %109, %111, %88 : vector<8x128xi1>, vector<8x128xi32>
      %c7_i32_41 = arith.constant 7 : i32
      %113 = arith.cmpi eq, %c2_i32, %c7_i32_41 : i32
      %114 = arith.select %113, %96, %90 : vector<8x1xf32>
      %115 = vector.broadcast %102 : vector<8x1xi32> to vector<8x256xi32>
      %116 = arith.cmpi eq, %43, %115 : vector<8x256xi32>
      %cst_42 = arith.constant 0xFF800000 : f32
      %117 = vector.broadcast %cst_42 : f32 to vector<8x256xf32>
      %118 = arith.select %116, %117, %94 : vector<8x256xi1>, vector<8x256xf32>
      %c3_i32 = arith.constant 3 : i32
      %cst_43 = arith.constant dense<0xFF800000> : vector<8xf32>
      %119 = vector.multi_reduction <maximumf>, %118, %cst_43 [1] : vector<8x256xf32> to vector<8xf32>
      %120 = vector.shape_cast %119 : vector<8xf32> to vector<8x1xf32>
      %121 = vector.broadcast %120 : vector<8x1xf32> to vector<8x256xf32>
      %122 = arith.cmpf oeq, %118, %121 : vector<8x256xf32>
      %c2147483647_i32_44 = arith.constant 2147483647 : i32
      %123 = vector.broadcast %c2147483647_i32_44 : i32 to vector<8x256xi32>
      %124 = arith.select %122, %43, %123 : vector<8x256xi1>, vector<8x256xi32>
      %cst_45 = arith.constant dense<2147483647> : vector<8xi32>
      %125 = vector.multi_reduction <minsi>, %124, %cst_45 [1] : vector<8x256xi32> to vector<8xi32>
      %126 = vector.shape_cast %125 : vector<8xi32> to vector<8x1xi32>
      %127 = vector.broadcast %c3_i32 : i32 to vector<8x128xi32>
      %128 = arith.cmpi eq, %6, %127 : vector<8x128xi32>
      %129 = vector.shape_cast %120 : vector<8x1xf32> to vector<8x1xf32>
      %130 = vector.broadcast %129 : vector<8x1xf32> to vector<8x128xf32>
      %131 = arith.select %128, %130, %107 : vector<8x128xi1>, vector<8x128xf32>
      %132 = vector.broadcast %c3_i32 : i32 to vector<8x128xi32>
      %133 = arith.cmpi eq, %6, %132 : vector<8x128xi32>
      %134 = vector.shape_cast %126 : vector<8x1xi32> to vector<8x1xi32>
      %135 = vector.broadcast %134 : vector<8x1xi32> to vector<8x128xi32>
      %136 = arith.select %133, %135, %112 : vector<8x128xi1>, vector<8x128xi32>
      %c7_i32_46 = arith.constant 7 : i32
      %137 = arith.cmpi eq, %c3_i32, %c7_i32_46 : i32
      %138 = arith.select %137, %120, %114 : vector<8x1xf32>
      %139 = vector.broadcast %126 : vector<8x1xi32> to vector<8x256xi32>
      %140 = arith.cmpi eq, %43, %139 : vector<8x256xi32>
      %cst_47 = arith.constant 0xFF800000 : f32
      %141 = vector.broadcast %cst_47 : f32 to vector<8x256xf32>
      %142 = arith.select %140, %141, %118 : vector<8x256xi1>, vector<8x256xf32>
      %c4_i32 = arith.constant 4 : i32
      %cst_48 = arith.constant dense<0xFF800000> : vector<8xf32>
      %143 = vector.multi_reduction <maximumf>, %142, %cst_48 [1] : vector<8x256xf32> to vector<8xf32>
      %144 = vector.shape_cast %143 : vector<8xf32> to vector<8x1xf32>
      %145 = vector.broadcast %144 : vector<8x1xf32> to vector<8x256xf32>
      %146 = arith.cmpf oeq, %142, %145 : vector<8x256xf32>
      %c2147483647_i32_49 = arith.constant 2147483647 : i32
      %147 = vector.broadcast %c2147483647_i32_49 : i32 to vector<8x256xi32>
      %148 = arith.select %146, %43, %147 : vector<8x256xi1>, vector<8x256xi32>
      %cst_50 = arith.constant dense<2147483647> : vector<8xi32>
      %149 = vector.multi_reduction <minsi>, %148, %cst_50 [1] : vector<8x256xi32> to vector<8xi32>
      %150 = vector.shape_cast %149 : vector<8xi32> to vector<8x1xi32>
      %151 = vector.broadcast %c4_i32 : i32 to vector<8x128xi32>
      %152 = arith.cmpi eq, %6, %151 : vector<8x128xi32>
      %153 = vector.shape_cast %144 : vector<8x1xf32> to vector<8x1xf32>
      %154 = vector.broadcast %153 : vector<8x1xf32> to vector<8x128xf32>
      %155 = arith.select %152, %154, %131 : vector<8x128xi1>, vector<8x128xf32>
      %156 = vector.broadcast %c4_i32 : i32 to vector<8x128xi32>
      %157 = arith.cmpi eq, %6, %156 : vector<8x128xi32>
      %158 = vector.shape_cast %150 : vector<8x1xi32> to vector<8x1xi32>
      %159 = vector.broadcast %158 : vector<8x1xi32> to vector<8x128xi32>
      %160 = arith.select %157, %159, %136 : vector<8x128xi1>, vector<8x128xi32>
      %c7_i32_51 = arith.constant 7 : i32
      %161 = arith.cmpi eq, %c4_i32, %c7_i32_51 : i32
      %162 = arith.select %161, %144, %138 : vector<8x1xf32>
      %163 = vector.broadcast %150 : vector<8x1xi32> to vector<8x256xi32>
      %164 = arith.cmpi eq, %43, %163 : vector<8x256xi32>
      %cst_52 = arith.constant 0xFF800000 : f32
      %165 = vector.broadcast %cst_52 : f32 to vector<8x256xf32>
      %166 = arith.select %164, %165, %142 : vector<8x256xi1>, vector<8x256xf32>
      %c5_i32 = arith.constant 5 : i32
      %cst_53 = arith.constant dense<0xFF800000> : vector<8xf32>
      %167 = vector.multi_reduction <maximumf>, %166, %cst_53 [1] : vector<8x256xf32> to vector<8xf32>
      %168 = vector.shape_cast %167 : vector<8xf32> to vector<8x1xf32>
      %169 = vector.broadcast %168 : vector<8x1xf32> to vector<8x256xf32>
      %170 = arith.cmpf oeq, %166, %169 : vector<8x256xf32>
      %c2147483647_i32_54 = arith.constant 2147483647 : i32
      %171 = vector.broadcast %c2147483647_i32_54 : i32 to vector<8x256xi32>
      %172 = arith.select %170, %43, %171 : vector<8x256xi1>, vector<8x256xi32>
      %cst_55 = arith.constant dense<2147483647> : vector<8xi32>
      %173 = vector.multi_reduction <minsi>, %172, %cst_55 [1] : vector<8x256xi32> to vector<8xi32>
      %174 = vector.shape_cast %173 : vector<8xi32> to vector<8x1xi32>
      %175 = vector.broadcast %c5_i32 : i32 to vector<8x128xi32>
      %176 = arith.cmpi eq, %6, %175 : vector<8x128xi32>
      %177 = vector.shape_cast %168 : vector<8x1xf32> to vector<8x1xf32>
      %178 = vector.broadcast %177 : vector<8x1xf32> to vector<8x128xf32>
      %179 = arith.select %176, %178, %155 : vector<8x128xi1>, vector<8x128xf32>
      %180 = vector.broadcast %c5_i32 : i32 to vector<8x128xi32>
      %181 = arith.cmpi eq, %6, %180 : vector<8x128xi32>
      %182 = vector.shape_cast %174 : vector<8x1xi32> to vector<8x1xi32>
      %183 = vector.broadcast %182 : vector<8x1xi32> to vector<8x128xi32>
      %184 = arith.select %181, %183, %160 : vector<8x128xi1>, vector<8x128xi32>
      %c7_i32_56 = arith.constant 7 : i32
      %185 = arith.cmpi eq, %c5_i32, %c7_i32_56 : i32
      %186 = arith.select %185, %168, %162 : vector<8x1xf32>
      %187 = vector.broadcast %174 : vector<8x1xi32> to vector<8x256xi32>
      %188 = arith.cmpi eq, %43, %187 : vector<8x256xi32>
      %cst_57 = arith.constant 0xFF800000 : f32
      %189 = vector.broadcast %cst_57 : f32 to vector<8x256xf32>
      %190 = arith.select %188, %189, %166 : vector<8x256xi1>, vector<8x256xf32>
      %c6_i32 = arith.constant 6 : i32
      %cst_58 = arith.constant dense<0xFF800000> : vector<8xf32>
      %191 = vector.multi_reduction <maximumf>, %190, %cst_58 [1] : vector<8x256xf32> to vector<8xf32>
      %192 = vector.shape_cast %191 : vector<8xf32> to vector<8x1xf32>
      %193 = vector.broadcast %192 : vector<8x1xf32> to vector<8x256xf32>
      %194 = arith.cmpf oeq, %190, %193 : vector<8x256xf32>
      %c2147483647_i32_59 = arith.constant 2147483647 : i32
      %195 = vector.broadcast %c2147483647_i32_59 : i32 to vector<8x256xi32>
      %196 = arith.select %194, %43, %195 : vector<8x256xi1>, vector<8x256xi32>
      %cst_60 = arith.constant dense<2147483647> : vector<8xi32>
      %197 = vector.multi_reduction <minsi>, %196, %cst_60 [1] : vector<8x256xi32> to vector<8xi32>
      %198 = vector.shape_cast %197 : vector<8xi32> to vector<8x1xi32>
      %199 = vector.broadcast %c6_i32 : i32 to vector<8x128xi32>
      %200 = arith.cmpi eq, %6, %199 : vector<8x128xi32>
      %201 = vector.shape_cast %192 : vector<8x1xf32> to vector<8x1xf32>
      %202 = vector.broadcast %201 : vector<8x1xf32> to vector<8x128xf32>
      %203 = arith.select %200, %202, %179 : vector<8x128xi1>, vector<8x128xf32>
      %204 = vector.broadcast %c6_i32 : i32 to vector<8x128xi32>
      %205 = arith.cmpi eq, %6, %204 : vector<8x128xi32>
      %206 = vector.shape_cast %198 : vector<8x1xi32> to vector<8x1xi32>
      %207 = vector.broadcast %206 : vector<8x1xi32> to vector<8x128xi32>
      %208 = arith.select %205, %207, %184 : vector<8x128xi1>, vector<8x128xi32>
      %c7_i32_61 = arith.constant 7 : i32
      %209 = arith.cmpi eq, %c6_i32, %c7_i32_61 : i32
      %210 = arith.select %209, %192, %186 : vector<8x1xf32>
      %211 = vector.broadcast %198 : vector<8x1xi32> to vector<8x256xi32>
      %212 = arith.cmpi eq, %43, %211 : vector<8x256xi32>
      %cst_62 = arith.constant 0xFF800000 : f32
      %213 = vector.broadcast %cst_62 : f32 to vector<8x256xf32>
      %214 = arith.select %212, %213, %190 : vector<8x256xi1>, vector<8x256xf32>
      %c7_i32_63 = arith.constant 7 : i32
      %cst_64 = arith.constant dense<0xFF800000> : vector<8xf32>
      %215 = vector.multi_reduction <maximumf>, %214, %cst_64 [1] : vector<8x256xf32> to vector<8xf32>
      %216 = vector.shape_cast %215 : vector<8xf32> to vector<8x1xf32>
      %217 = vector.broadcast %216 : vector<8x1xf32> to vector<8x256xf32>
      %218 = arith.cmpf oeq, %214, %217 : vector<8x256xf32>
      %c2147483647_i32_65 = arith.constant 2147483647 : i32
      %219 = vector.broadcast %c2147483647_i32_65 : i32 to vector<8x256xi32>
      %220 = arith.select %218, %43, %219 : vector<8x256xi1>, vector<8x256xi32>
      %cst_66 = arith.constant dense<2147483647> : vector<8xi32>
      %221 = vector.multi_reduction <minsi>, %220, %cst_66 [1] : vector<8x256xi32> to vector<8xi32>
      %222 = vector.shape_cast %221 : vector<8xi32> to vector<8x1xi32>
      %223 = vector.broadcast %c7_i32_63 : i32 to vector<8x128xi32>
      %224 = arith.cmpi eq, %6, %223 : vector<8x128xi32>
      %225 = vector.shape_cast %216 : vector<8x1xf32> to vector<8x1xf32>
      %226 = vector.broadcast %225 : vector<8x1xf32> to vector<8x128xf32>
      %227 = arith.select %224, %226, %203 : vector<8x128xi1>, vector<8x128xf32>
      %228 = vector.broadcast %c7_i32_63 : i32 to vector<8x128xi32>
      %229 = arith.cmpi eq, %6, %228 : vector<8x128xi32>
      %230 = vector.shape_cast %222 : vector<8x1xi32> to vector<8x1xi32>
      %231 = vector.broadcast %230 : vector<8x1xi32> to vector<8x128xi32>
      %232 = arith.select %229, %231, %208 : vector<8x128xi1>, vector<8x128xi32>
      %c7_i32_67 = arith.constant 7 : i32
      %233 = arith.cmpi eq, %c7_i32_63, %c7_i32_67 : i32
      %234 = arith.select %233, %216, %210 : vector<8x1xf32>
      %235 = vector.broadcast %222 : vector<8x1xi32> to vector<8x256xi32>
      %236 = arith.cmpi eq, %43, %235 : vector<8x256xi32>
      %cst_68 = arith.constant 0xFF800000 : f32
      %237 = vector.broadcast %cst_68 : f32 to vector<8x256xf32>
      %238 = arith.select %236, %237, %214 : vector<8x256xi1>, vector<8x256xf32>
      %c8_i32 = arith.constant 8 : i32
      %c0_69 = arith.constant 0 : index
      %c0_70 = arith.constant 0 : index
      %c0_71 = arith.constant 0 : index
      %239 = vector.load %arg13[%c0_69, %c0_70, %c0_71] : memref<1x8x128xf32, #tpu.memory_space<vmem>>, vector<1x8x128xf32>
      %240 = vector.shape_cast %239 : vector<1x8x128xf32> to vector<8x128xf32>
      %241 = vector.shape_cast %227 : vector<8x128xf32> to vector<1x8x128xf32>
      tpu.vector_store %arg13[%c0_69, %c0_70, %c0_71], %241 {strides = array<i32>} : memref<1x8x128xf32, #tpu.memory_space<vmem>>, vector<1x8x128xf32>,
      %c0_72 = arith.constant 0 : index
      %c0_73 = arith.constant 0 : index
      %c0_74 = arith.constant 0 : index
      %242 = vector.load %arg14[%c0_72, %c0_73, %c0_74] : memref<1x8x128xi32, #tpu.memory_space<vmem>>, vector<1x8x128xi32>
      %243 = vector.shape_cast %242 : vector<1x8x128xi32> to vector<8x128xi32>
      %244 = vector.shape_cast %232 : vector<8x128xi32> to vector<1x8x128xi32>
      tpu.vector_store %arg14[%c0_72, %c0_73, %c0_74], %244 {strides = array<i32>} : memref<1x8x128xi32, #tpu.memory_space<vmem>>, vector<1x8x128xi32>,
      %c0_75 = arith.constant 0 : index
      %c0_76 = arith.constant 0 : index
      %245 = vector.load %arg16[%c0_75, %c0_76] : memref<8x1xf32, #tpu.memory_space<vmem>>, vector<8x1xf32>
      tpu.vector_store %arg16[%c0_75, %c0_76], %234 {strides = array<i32>} : memref<8x1xf32, #tpu.memory_space<vmem>>, vector<8x1xf32>,
    } else {
    }
    %c1_i32_18 = arith.constant 1 : i32
    return
  }
  func.func @transform_0(%arg0: i32, %arg1: i32) -> (i32, i32) {
    %c0_i32 = arith.constant 0 : i32
    %c0_i32_0 = arith.constant 0 : i32
    %c0_i32_1 = arith.constant 0 : i32
    return %c0_i32, %c0_i32_0 : i32, i32
  }
  func.func @transform_1(%arg0: i32, %arg1: i32) -> (i32, i32) {
    %c0_i32 = arith.constant 0 : i32
    %c0_i32_0 = arith.constant 0 : i32
    %c0_i32_1 = arith.constant 0 : i32
    return %c0_i32, %c0_i32_0 : i32, i32
  }
  func.func @transform_2(%arg0: i32, %arg1: i32) -> (i32, i32) {
    %c0_i32 = arith.constant 0 : i32
    %c0_i32_0 = arith.constant 0 : i32
    %c0_i32_1 = arith.constant 0 : i32
    return %c0_i32, %c0_i32_0 : i32, i32
  }
  func.func @transform_3(%arg0: i32, %arg1: i32) -> (i32, i32) {
    %c0_i32 = arith.constant 0 : i32
    %c0_i32_0 = arith.constant 0 : i32
    %c0_i32_1 = arith.constant 0 : i32
    return %c0_i32, %c0_i32_0 : i32, i32
  }
  func.func @transform_4(%arg0: i32, %arg1: i32) -> (i32, i32) {
    %c0_i32 = arith.constant 0 : i32
    %c0_i32_0 = arith.constant 0 : i32
    %c0_i32_1 = arith.constant 0 : i32
    return %c0_i32, %c0_i32_0 : i32, i32
  }
  func.func @transform_5(%arg0: i32, %arg1: i32) -> (i32, i32) {
    %c0_i32 = arith.constant 0 : i32
    %c0_i32_0 = arith.constant 0 : i32
    %c0_i32_1 = arith.constant 0 : i32
    return %c0_i32, %c0_i32_0 : i32, i32
  }
  func.func @transform_6(%arg0: i32, %arg1: i32) -> (i32, i32) {
    %c0_i32 = arith.constant 0 : i32
    %c0_i32_0 = arith.constant 0 : i32
    %c0_i32_1 = arith.constant 0 : i32
    return %c0_i32, %c0_i32_0 : i32, i32
  }
  func.func @transform_7(%arg0: i32, %arg1: i32) -> (i32, i32) {
    %c0_i32 = arith.constant 0 : i32
    %c0_i32_0 = arith.constant 0 : i32
    %c0_i32_1 = arith.constant 0 : i32
    return %c0_i32, %c0_i32_0 : i32, i32
  }
  func.func @transform_8(%arg0: i32, %arg1: i32) -> (i32, i32) {
    %c0_i32 = arith.constant 0 : i32
    %c0_i32_0 = arith.constant 0 : i32
    %c0_i32_1 = arith.constant 0 : i32
    return %c0_i32, %c0_i32_0 : i32, i32
  }
  func.func @transform_9(%arg0: i32, %arg1: i32) -> (i32, i32, i32) {
    %c1_i32 = arith.constant 1 : i32
    %0 = arith.muli %arg0, %c1_i32 : i32
    %1 = arith.addi %0, %arg1 : i32
    %c0_i32 = arith.constant 0 : i32
    %c0_i32_0 = arith.constant 0 : i32
    %c0_i32_1 = arith.constant 0 : i32
    return %1, %c0_i32, %c0_i32_0 : i32, i32, i32
  }
  func.func @transform_10(%arg0: i32, %arg1: i32) -> (i32, i32, i32) {
    %c1_i32 = arith.constant 1 : i32
    %0 = arith.muli %arg0, %c1_i32 : i32
    %1 = arith.addi %0, %arg1 : i32
    %c0_i32 = arith.constant 0 : i32
    %c0_i32_0 = arith.constant 0 : i32
    %c0_i32_1 = arith.constant 0 : i32
    return %1, %c0_i32, %c0_i32_0 : i32, i32, i32
  }
  func.func @transform_11(%arg0: i32, %arg1: i32) -> (i32, i32, i32) {
    %c0_i32 = arith.constant 0 : i32
    %c0_i32_0 = arith.constant 0 : i32
    %c0_i32_1 = arith.constant 0 : i32
    return %arg0, %c0_i32, %c0_i32_0 : i32, i32, i32
  }
  func.func @transform_12(%arg0: i32, %arg1: i32) -> (i32, i32, i32) {
    %c0_i32 = arith.constant 0 : i32
    %c0_i32_0 = arith.constant 0 : i32
    %c0_i32_1 = arith.constant 0 : i32
    return %arg0, %c0_i32, %c0_i32_0 : i32, i32, i32
  }
}

</mosaic_0001>

<llo_original>
// kernel: tpu_custom_call.1
$region0: #{tpu_custom_call.1}
  #allocation0 [shape = 'u32[]', space=smem, size = 0x4, offset = 0x4, fixed_abs, tag = 'smem constant byte address 0x4 - core index']
  #allocation1 [shape = 'u32[72,128]{1,0:T(1,128)}', space=vmem, size = 0x9000, scoped, tag = 'internal scratch']
  #allocation2 [shape = 'bf16[8,32]{1,0:T(8,128)(2,1)}', space=vmem, size = 0x800, scoped, tag = 'scratch operand']
  #allocation3 [shape = 'f32[8,1]{1,0:T(8,128)}', space=vmem, size = 0x1000, scoped, tag = 'scratch operand']
  %s0 = inlined_call_operand.hbm [shape: f32[8,16], index: 0, kind: input, shape index: {}]
  %s1 = inlined_call_operand.hbm [shape: f32[16,32], index: 1, kind: input, shape index: {}]
  %s2 = inlined_call_operand.vmem [shape: f32[1,32], index: 2, kind: input, shape index: {}]
  %s3 = inlined_call_operand.hbm [shape: f32[1,32], index: 3, kind: input, shape index: {}]
  %s4 = inlined_call_operand.hbm [shape: f32[1,32], index: 4, kind: input, shape index: {}]
  %s5 = inlined_call_operand.hbm [shape: f32[32,32], index: 5, kind: input, shape index: {}]
  %s6 = inlined_call_operand.vmem [shape: f32[1,32], index: 6, kind: input, shape index: {}]
  %s7 = inlined_call_operand.vmem [shape: f32[1,32], index: 7, kind: input, shape index: {}]
  %s8 = inlined_call_operand.vmem [shape: f32[1,32], index: 8, kind: input, shape index: {}]
  %s9 = inlined_call_operand.hbm [shape: bf16[2,32,128], index: 9, kind: input, shape index: {}]
  %s10 = inlined_call_operand.vmem [shape: f32[2,1,128], index: 10, kind: input, shape index: {}]
  %s11 = inlined_call_operand.hbm [shape: f32[2,8,128], index: 11, kind: output, shape index: {0}]
  %s12 = inlined_call_operand.hbm [shape: s32[2,8,128], index: 12, kind: output, shape index: {1}]
  %13 = xla_tuple %s11, %s12
  %s14 = sld [smem:[#allocation0]]
  $region117: #{tpu_custom_call.1} parent=0
    _
  %s16 = ssub.s32 1, %s14
  %s17 = scalar_select 0, %s16, %s14
  $region1: #{tpu_custom_call.1} parent=0
    #allocation4 [shape = 'u8[4096]{0}', space=vmem, size = 0x1000, scoped, tag = 'input window, operand 0, single buffered']
    #allocation5 [shape = 's32[2]{0}', space=sflag, size = 0x8, scoped, tag = 'scoped memory for tpu_custom_call.1']
    #allocation6 [shape = 's32[2]{0}', space=sflag, size = 0x8, scoped, tag = 'scoped memory for tpu_custom_call.1']
    #allocation7 [shape = 'u8[8192]{0}', space=vmem, size = 0x2000, scoped, tag = 'input window, operand 1, single buffered']
    #allocation8 [shape = 's32[1]{0}', space=sflag, size = 0x4, scoped, tag = 'scoped memory for tpu_custom_call.1']
    #allocation9 [shape = 'u8[512]{0}', space=vmem, size = 0x400, scoped, tag = 'input window, operand 3, single buffered']
    #allocation10 [shape = 'u8[512]{0}', space=vmem, size = 0x400, scoped, tag = 'input window, operand 4, single buffered']
    #allocation11 [shape = 's32[1]{0}', space=sflag, size = 0x4, scoped, tag = 'scoped memory for tpu_custom_call.1']
    #allocation12 [shape = 'u8[16384]{0}', space=vmem, size = 0x4000, scoped, tag = 'input window, operand 5, single buffered']
    #allocation13 [shape = 'u8[16384]{0}', space=vmem, size = 0x4000, scoped, tag = 'input window, operand 9']
    #allocation14 [shape = 's32[2]{0}', space=sflag, size = 0x8, scoped, tag = 'scoped memory for tpu_custom_call.1']
    #allocation15 [shape = 'u8[8192]{0}', space=vmem, size = 0x2000, scoped, tag = 'output window, operand 0']
    #allocation16 [shape = 'u8[8192]{0}', space=vmem, size = 0x2000, scoped, tag = 'output window, operand 1']
    #allocation17 [shape = 's32[2]{0}', space=sflag, size = 0x8, scoped, tag = 'scoped memory for tpu_custom_call.1']
    %18 = vsyncpa [#allocation5], 0
    %19 = vsyncpa [#allocation8], 0
    %20 = vsyncpa [#allocation11], 0
    %21 = vsyncpa [#allocation14], 0
    %s22 = scalar_lea.sflag [#allocation14], 1
    %23 = vsyncpa %s22, 0
    %24 = vsyncpa [#allocation6], 0
    %s25 = scalar_lea.sflag [#allocation6], 1
    %26 = vsyncpa %s25, 0
    %27 = vsyncpa [#allocation17], 0
    %s28 = scalar_lea.sflag [#allocation17], 1
    %29 = vsyncpa %s28, 0
    loop: start=0, step=1, limit=4
    $region2: #{tpu_custom_call.1} parent=1 // loop_pre_header
      _
    $region3: #{tpu_custom_call.1} parent=1 // loop_header
      %s31 = sphi 0, %s35
      %p32 = scmp.ge.s32.totalorder %s31, 4
      %s38 = sphi 0, %s50
      %s39 = sphi 0, %s46
      %s40 = sphi 0, %s38
      %s41 = sphi 0, %s39
      %s42 = sphi 0, %s40
      %s43 = sphi 0, %s41
      %s51 = sphi 0, %s51
      %s53 = sphi 0, %s51
      %s54 = sphi 0, %s53
      %s68 = sphi 0, %s54
      %s72 = sphi 0, %s72
      %s74 = sphi 0, %s72
      %s75 = sphi 0, %s74
      %s89 = sphi 0, %s75
      %s93 = sphi 0, %s93
      %s95 = sphi 0, %s93
      %s96 = sphi 0, %s95
      %s110 = sphi 0, %s96
      %s114 = sphi 0, %s114
      %s116 = sphi 0, %s114
      %s117 = sphi 0, %s116
      %s131 = sphi 0, %s117
      %s135 = sphi 0, %s135
      %s137 = sphi 0, %s135
      %s138 = sphi 0, %s137
      %s152 = sphi 0, %s138
      %s156 = sphi 0, %s156
      %s158 = sphi 0, %s156
      %s159 = sphi 0, %s158
      %s173 = sphi 0, %s159
      %s177 = sphi 0, %s177
      %s179 = sphi 0, %s177
      %s180 = sphi 0, %s179
      %s194 = sphi 0, %s180
      %s198 = sphi 0, %s198
      %s200 = sphi 0, %s198
      %s201 = sphi 0, %s200
      %s215 = sphi 0, %s201
      %s219 = sphi 0, %s219
      %s221 = sphi 0, %s219
      %s222 = sphi 0, %s221
      %s236 = sphi 0, %s222
      %s244 = sphi 0, %s246
      %s247 = sphi 0, %s244
      %s248 = sphi 0, %s247
      %s264 = sphi 0, %s248
      %s272 = sphi 0, %s274
      %s275 = sphi 0, %s272
      %s276 = sphi 0, %s275
      %s292 = sphi 0, %s276
      %s298 = sphi 0, %s300
      %s301 = sphi 0, %s298
      %s302 = sphi 0, %s301
      %s318 = sphi 0, %s302
      %s324 = sphi 0, %s326
      %s327 = sphi 0, %s324
      %s328 = sphi 0, %s327
      %s344 = sphi 0, %s328
    $region4: #{tpu_custom_call.1} parent=1 // loop_header_branch
      %34 = sbr.rel (%p32) target = $region8
    $region5: #{tpu_custom_call.1} parent=1 // loop_body
      %s36 = ssub.s32 %s31, 1
      %s37 = ssub.s32 %s31, 2
      %s44 = sadd.s32 1, %s39
      %p45 = scmp.ge.s32.totalorder %s44, 1
      %s46 = scalar_select %p45, 0, %s44
      %s47 = sadd.s32 1, %s38
      %s48 = scalar_select %p45, %s47, %s38
      %p49 = scmp.ge.s32.totalorder %s48, 2
      %s50 = scalar_select %p49, 0, %s48
      %s52 = sadd.s32 %s51, 1
      %p55 = scmp.eq.s32.totalorder %s31, 1
      %p56 = scmp.ne.s32.totalorder %s51, %s53
      %p57 = scmp.eq.s32.totalorder %s31, 0
      %p58 = por %p56, %p57
      %p59 = scmp.ne.s32.totalorder %s51, %s53
      %p60 = scmp.eq.s32.totalorder %s36, 1
      %p61 = por %p59, %p60
      %p62 = scmp.ne.s32.totalorder %s53, %s54
      %p63 = scmp.eq.s32.totalorder %s36, 0
      %p64 = por %p62, %p63
      %p65 = scmp.ne.s32.totalorder %s53, %s54
      %p66 = scmp.eq.s32.totalorder %s37, 1
      %p67 = por %p65, %p66
      %p69 = scmp.ne.s32.totalorder %s54, %s68
      %p70 = scmp.eq.s32.totalorder %s37, 0
      %p71 = por %p69, %p70
      %s73 = sadd.s32 %s72, 1
      %p76 = scmp.eq.s32.totalorder %s31, 1
      %p77 = scmp.ne.s32.totalorder %s72, %s74
      %p78 = scmp.eq.s32.totalorder %s31, 0
      %p79 = por %p77, %p78
      %p80 = scmp.ne.s32.totalorder %s72, %s74
      %p81 = scmp.eq.s32.totalorder %s36, 1
      %p82 = por %p80, %p81
      %p83 = scmp.ne.s32.totalorder %s74, %s75
      %p84 = scmp.eq.s32.totalorder %s36, 0
      %p85 = por %p83, %p84
      %p86 = scmp.ne.s32.totalorder %s74, %s75
      %p87 = scmp.eq.s32.totalorder %s37, 1
      %p88 = por %p86, %p87
      %p90 = scmp.ne.s32.totalorder %s75, %s89
      %p91 = scmp.eq.s32.totalorder %s37, 0
      %p92 = por %p90, %p91
      %s94 = sadd.s32 %s93, 1
      %p97 = scmp.eq.s32.totalorder %s31, 1
      %p98 = scmp.ne.s32.totalorder %s93, %s95
      %p99 = scmp.eq.s32.totalorder %s31, 0
      %p100 = por %p98, %p99
      %p101 = scmp.ne.s32.totalorder %s93, %s95
      %p102 = scmp.eq.s32.totalorder %s36, 1
      %p103 = por %p101, %p102
      %p104 = scmp.ne.s32.totalorder %s95, %s96
      %p105 = scmp.eq.s32.totalorder %s36, 0
      %p106 = por %p104, %p105
      %p107 = scmp.ne.s32.totalorder %s95, %s96
      %p108 = scmp.eq.s32.totalorder %s37, 1
      %p109 = por %p107, %p108
      %p111 = scmp.ne.s32.totalorder %s96, %s110
      %p112 = scmp.eq.s32.totalorder %s37, 0
      %p113 = por %p111, %p112
      %s115 = sadd.s32 %s114, 1
      %p118 = scmp.eq.s32.totalorder %s31, 1
      %p119 = scmp.ne.s32.totalorder %s114, %s116
      %p120 = scmp.eq.s32.totalorder %s31, 0
      %p121 = por %p119, %p120
      %p122 = scmp.ne.s32.totalorder %s114, %s116
      %p123 = scmp.eq.s32.totalorder %s36, 1
      %p124 = por %p122, %p123
      %p125 = scmp.ne.s32.totalorder %s116, %s117
      %p126 = scmp.eq.s32.totalorder %s36, 0
      %p127 = por %p125, %p126
      %p128 = scmp.ne.s32.totalorder %s116, %s117
      %p129 = scmp.eq.s32.totalorder %s37, 1
      %p130 = por %p128, %p129
      %p132 = scmp.ne.s32.totalorder %s117, %s131
      %p133 = scmp.eq.s32.totalorder %s37, 0
      %p134 = por %p132, %p133
      %s136 = sadd.s32 %s135, 1
      %p139 = scmp.eq.s32.totalorder %s31, 1
      %p140 = scmp.ne.s32.totalorder %s135, %s137
      %p141 = scmp.eq.s32.totalorder %s31, 0
      %p142 = por %p140, %p141
      %p143 = scmp.ne.s32.totalorder %s135, %s137
      %p144 = scmp.eq.s32.totalorder %s36, 1
      %p145 = por %p143, %p144
      %p146 = scmp.ne.s32.totalorder %s137, %s138
      %p147 = scmp.eq.s32.totalorder %s36, 0
      %p148 = por %p146, %p147
      %p149 = scmp.ne.s32.totalorder %s137, %s138
      %p150 = scmp.eq.s32.totalorder %s37, 1
      %p151 = por %p149, %p150
      %p153 = scmp.ne.s32.totalorder %s138, %s152
      %p154 = scmp.eq.s32.totalorder %s37, 0
      %p155 = por %p153, %p154
      %s157 = sadd.s32 %s156, 1
      %p160 = scmp.eq.s32.totalorder %s31, 1
      %p161 = scmp.ne.s32.totalorder %s156, %s158
      %p162 = scmp.eq.s32.totalorder %s31, 0
      %p163 = por %p161, %p162
      %p164 = scmp.ne.s32.totalorder %s156, %s158
      %p165 = scmp.eq.s32.totalorder %s36, 1
      %p166 = por %p164, %p165
      %p167 = scmp.ne.s32.totalorder %s158, %s159
      %p168 = scmp.eq.s32.totalorder %s36, 0
      %p169 = por %p167, %p168
      %p170 = scmp.ne.s32.totalorder %s158, %s159
      %p171 = scmp.eq.s32.totalorder %s37, 1
      %p172 = por %p170, %p171
      %p174 = scmp.ne.s32.totalorder %s159, %s173
      %p175 = scmp.eq.s32.totalorder %s37, 0
      %p176 = por %p174, %p175
      %s178 = sadd.s32 %s177, 1
      %p181 = scmp.eq.s32.totalorder %s31, 1
      %p182 = scmp.ne.s32.totalorder %s177, %s179
      %p183 = scmp.eq.s32.totalorder %s31, 0
      %p184 = por %p182, %p183
      %p185 = scmp.ne.s32.totalorder %s177, %s179
      %p186 = scmp.eq.s32.totalorder %s36, 1
      %p187 = por %p185, %p186
      %p188 = scmp.ne.s32.totalorder %s179, %s180
      %p189 = scmp.eq.s32.totalorder %s36, 0
      %p190 = por %p188, %p189
      %p191 = scmp.ne.s32.totalorder %s179, %s180
      %p192 = scmp.eq.s32.totalorder %s37, 1
      %p193 = por %p191, %p192
      %p195 = scmp.ne.s32.totalorder %s180, %s194
      %p196 = scmp.eq.s32.totalorder %s37, 0
      %p197 = por %p195, %p196
      %s199 = sadd.s32 %s198, 1
      %p202 = scmp.eq.s32.totalorder %s31, 1
      %p203 = scmp.ne.s32.totalorder %s198, %s200
      %p204 = scmp.eq.s32.totalorder %s31, 0
      %p205 = por %p203, %p204
      %p206 = scmp.ne.s32.totalorder %s198, %s200
      %p207 = scmp.eq.s32.totalorder %s36, 1
      %p208 = por %p206, %p207
      %p209 = scmp.ne.s32.totalorder %s200, %s201
      %p210 = scmp.eq.s32.totalorder %s36, 0
      %p211 = por %p209, %p210
      %p212 = scmp.ne.s32.totalorder %s200, %s201
      %p213 = scmp.eq.s32.totalorder %s37, 1
      %p214 = por %p212, %p213
      %p216 = scmp.ne.s32.totalorder %s201, %s215
      %p217 = scmp.eq.s32.totalorder %s37, 0
      %p218 = por %p216, %p217
      %s220 = sadd.s32 %s219, 1
      %p223 = scmp.eq.s32.totalorder %s31, 1
      %p224 = scmp.ne.s32.totalorder %s219, %s221
      %p225 = scmp.eq.s32.totalorder %s31, 0
      %p226 = por %p224, %p225
      %p227 = scmp.ne.s32.totalorder %s219, %s221
      %p228 = scmp.eq.s32.totalorder %s36, 1
      %p229 = por %p227, %p228
      %p230 = scmp.ne.s32.totalorder %s221, %s222
      %p231 = scmp.eq.s32.totalorder %s36, 0
      %p232 = por %p230, %p231
      %p233 = scmp.ne.s32.totalorder %s221, %s222
      %p234 = scmp.eq.s32.totalorder %s37, 1
      %p235 = por %p233, %p234
      %p237 = scmp.ne.s32.totalorder %s222, %s236
      %p238 = scmp.eq.s32.totalorder %s37, 0
      %p239 = por %p237, %p238
      %s240 = sadd.s32 %s38, %s39
      %s241 = sadd.s32 %s50, %s46
      %s242 = ssub.s32 %s240, %s241
      %p243 = scmp.eq.s32.totalorder %s242, 0
      %s245 = sadd.s32 %s244, 1
      %s246 = scalar_select %p243, %s244, %s245
      %p249 = pneg %p243
      %p250 = scmp.eq.s32.totalorder %s31, 1
      %p251 = por %p249, %p250
      %p252 = scmp.ne.s32.totalorder %s244, %s247
      %p253 = scmp.eq.s32.totalorder %s31, 0
      %p254 = por %p252, %p253
      %p255 = scmp.ne.s32.totalorder %s244, %s247
      %p256 = scmp.eq.s32.totalorder %s36, 1
      %p257 = por %p255, %p256
      %p258 = scmp.ne.s32.totalorder %s247, %s248
      %p259 = scmp.eq.s32.totalorder %s36, 0
      %p260 = por %p258, %p259
      %p261 = scmp.ne.s32.totalorder %s247, %s248
      %p262 = scmp.eq.s32.totalorder %s37, 1
      %p263 = por %p261, %p262
      %p265 = scmp.ne.s32.totalorder %s248, %s264
      %p266 = scmp.eq.s32.totalorder %s37, 0
      %p267 = por %p265, %p266
      %s268 = sadd.s32 %s38, %s39
      %s269 = sadd.s32 %s50, %s46
      %s270 = ssub.s32 %s268, %s269
      %p271 = scmp.eq.s32.totalorder %s270, 0
      %s273 = sadd.s32 %s272, 1
      %s274 = scalar_select %p271, %s272, %s273
      %p277 = pneg %p271
      %p278 = scmp.eq.s32.totalorder %s31, 1
      %p279 = por %p277, %p278
      %p280 = scmp.ne.s32.totalorder %s272, %s275
      %p281 = scmp.eq.s32.totalorder %s31, 0
      %p282 = por %p280, %p281
      %p283 = scmp.ne.s32.totalorder %s272, %s275
      %p284 = scmp.eq.s32.totalorder %s36, 1
      %p285 = por %p283, %p284
      %p286 = scmp.ne.s32.totalorder %s275, %s276
      %p287 = scmp.eq.s32.totalorder %s36, 0
      %p288 = por %p286, %p287
      %p289 = scmp.ne.s32.totalorder %s275, %s276
      %p290 = scmp.eq.s32.totalorder %s37, 1
      %p291 = por %p289, %p290
      %p293 = scmp.ne.s32.totalorder %s276, %s292
      %p294 = scmp.eq.s32.totalorder %s37, 0
      %p295 = por %p293, %p294
      %s296 = ssub.s32 %s38, %s50
      %p297 = scmp.eq.s32.totalorder %s296, 0
      %s299 = sadd.s32 %s298, 1
      %s300 = scalar_select %p297, %s298, %s299
      %p303 = pneg %p297
      %p304 = scmp.eq.s32.totalorder %s31, 1
      %p305 = por %p303, %p304
      %p306 = scmp.ne.s32.totalorder %s298, %s301
      %p307 = scmp.eq.s32.totalorder %s31, 0
      %p308 = por %p306, %p307
      %p309 = scmp.ne.s32.totalorder %s298, %s301
      %p310 = scmp.eq.s32.totalorder %s36, 1
      %p311 = por %p309, %p310
      %p312 = scmp.ne.s32.totalorder %s301, %s302
      %p313 = scmp.eq.s32.totalorder %s36, 0
      %p314 = por %p312, %p313
      %p315 = scmp.ne.s32.totalorder %s301, %s302
      %p316 = scmp.eq.s32.totalorder %s37, 1
      %p317 = por %p315, %p316
      %p319 = scmp.ne.s32.totalorder %s302, %s318
      %p320 = scmp.eq.s32.totalorder %s37, 0
      %p321 = por %p319, %p320
      %s322 = ssub.s32 %s38, %s50
      %p323 = scmp.eq.s32.totalorder %s322, 0
      %s325 = sadd.s32 %s324, 1
      %s326 = scalar_select %p323, %s324, %s325
      %p329 = pneg %p323
      %p330 = scmp.eq.s32.totalorder %s31, 1
      %p331 = por %p329, %p330
      %p332 = scmp.ne.s32.totalorder %s324, %s327
      %p333 = scmp.eq.s32.totalorder %s31, 0
      %p334 = por %p332, %p333
      %p335 = scmp.ne.s32.totalorder %s324, %s327
      %p336 = scmp.eq.s32.totalorder %s36, 1
      %p337 = por %p335, %p336
      %p338 = scmp.ne.s32.totalorder %s327, %s328
      %p339 = scmp.eq.s32.totalorder %s36, 0
      %p340 = por %p338, %p339
      %p341 = scmp.ne.s32.totalorder %s327, %s328
      %p342 = scmp.eq.s32.totalorder %s37, 1
      %p343 = por %p341, %p342
      %p345 = scmp.ne.s32.totalorder %s328, %s344
      %p346 = scmp.eq.s32.totalorder %s37, 0
      %p347 = por %p345, %p346
      %p348 = scmp.le.s32.totalorder 1, %s31
      %p349 = scmp.lt.s32.totalorder %s31, 3
      %p350 = pnand %p348, %p349
      %p351 = pneg %p350
      // Predicated region
      $region9: #{tpu_custom_call.1} parent=5 // pred_check
        _
      $region10: #{tpu_custom_call.1} parent=5 // pred_check_branch
        %353 = sbr.rel (%p350) target = $region12
      $region11: #{tpu_custom_call.1} parent=5 // pred_region
        %s354 = ssub.s32 %s31, 1
        // Predicated region
        $region13: #{tpu_custom_call.1} parent=11 // pred_check
          %p355 = pneg %p64
        $region14: #{tpu_custom_call.1} parent=11 // pred_check_branch
          %357 = sbr.rel (%p355) target = $region16
        $region15: #{tpu_custom_call.1} parent=11 // pred_region
          %359 = vsyncadd [#allocation5], 0
          %s361 = sshll.u32 %s0, 4
          %s362 = int_to_ptr.hbm [resolvable:$true] %s361
          %s363 = sshll.u32 [#allocation4], 4
          %s364 = int_to_ptr.vmem [resolvable:$true] %s363
          %366 = dma.hbm_to_vmem [thread:$0]  %s362, 128, %s364, [#allocation5]
        $region16: #{tpu_custom_call.1} parent=11 // pred_fallthru
          _
        // Predicated region
        $region17: #{tpu_custom_call.1} parent=11 // pred_check
          %p367 = pneg %p85
        $region18: #{tpu_custom_call.1} parent=11 // pred_check_branch
          %369 = sbr.rel (%p367) target = $region20
        $region19: #{tpu_custom_call.1} parent=11 // pred_region
          %371 = vsyncadd [#allocation8], 0
          %s372 = sshll.u32 %s1, 4
          %s373 = int_to_ptr.hbm [resolvable:$true] %s372
          %s374 = sshll.u32 [#allocation7], 4
          %s375 = int_to_ptr.vmem [resolvable:$true] %s374
          %380 = dma.hbm_to_vmem [thread:$0]  %s373, 256, %s375, [#allocation8], 128, 128, 8
        $region20: #{tpu_custom_call.1} parent=11 // pred_fallthru
          _
        // Predicated region
        $region21: #{tpu_custom_call.1} parent=11 // pred_check
          %p381 = pneg %p106
        $region22: #{tpu_custom_call.1} parent=11 // pred_check_branch
          %383 = sbr.rel (%p381) target = $region24
        $region23: #{tpu_custom_call.1} parent=11 // pred_region
          _
        $region24: #{tpu_custom_call.1} parent=11 // pred_fallthru
          _
        // Predicated region
        $region25: #{tpu_custom_call.1} parent=11 // pred_check
          %p384 = pneg %p127
        $region26: #{tpu_custom_call.1} parent=11 // pred_check_branch
          %386 = sbr.rel (%p384) target = $region28
        $region27: #{tpu_custom_call.1} parent=11 // pred_region
          %388 = vsyncadd [#allocation8], 0
          %s390 = sshll.u32 %s3, 4
          %s391 = int_to_ptr.hbm [resolvable:$true] %s390
          %s392 = sshll.u32 [#allocation9], 4
          %s393 = int_to_ptr.vmem [resolvable:$true] %s392
          %395 = dma.hbm_to_vmem [thread:$0]  %s391, 16, %s393, [#allocation8]
        $region28: #{tpu_custom_call.1} parent=11 // pred_fallthru
          _
        // Predicated region
        $region29: #{tpu_custom_call.1} parent=11 // pred_check
          %p396 = pneg %p148
        $region30: #{tpu_custom_call.1} parent=11 // pred_check_branch
          %398 = sbr.rel (%p396) target = $region32
        $region31: #{tpu_custom_call.1} parent=11 // pred_region
          %400 = vsyncadd [#allocation11], 0
          %s402 = sshll.u32 %s4, 4
          %s403 = int_to_ptr.hbm [resolvable:$true] %s402
          %s404 = sshll.u32 [#allocation10], 4
          %s405 = int_to_ptr.vmem [resolvable:$true] %s404
          %407 = dma.hbm_to_vmem [thread:$0]  %s403, 16, %s405, [#allocation11]
        $region32: #{tpu_custom_call.1} parent=11 // pred_fallthru
          _
        // Predicated region
        $region33: #{tpu_custom_call.1} parent=11 // pred_check
          %p408 = pneg %p169
        $region34: #{tpu_custom_call.1} parent=11 // pred_check_branch
          %410 = sbr.rel (%p408) target = $region36
        $region35: #{tpu_custom_call.1} parent=11 // pred_region
          %412 = vsyncadd [#allocation11], 0
          %s413 = sshll.u32 %s5, 4
          %s414 = int_to_ptr.hbm [resolvable:$true] %s413
          %s415 = sshll.u32 [#allocation12], 4
          %s416 = int_to_ptr.vmem [resolvable:$true] %s415
          %421 = dma.hbm_to_vmem [thread:$0]  %s414, 512, %s416, [#allocation11], 128, 128, 8
        $region36: #{tpu_custom_call.1} parent=11 // pred_fallthru
          _
        // Predicated region
        $region37: #{tpu_custom_call.1} parent=11 // pred_check
          %p422 = pneg %p190
        $region38: #{tpu_custom_call.1} parent=11 // pred_check_branch
          %424 = sbr.rel (%p422) target = $region40
        $region39: #{tpu_custom_call.1} parent=11 // pred_region
          _
        $region40: #{tpu_custom_call.1} parent=11 // pred_fallthru
          _
        // Predicated region
        $region41: #{tpu_custom_call.1} parent=11 // pred_check
          %p425 = pneg %p211
        $region42: #{tpu_custom_call.1} parent=11 // pred_check_branch
          %427 = sbr.rel (%p425) target = $region44
        $region43: #{tpu_custom_call.1} parent=11 // pred_region
          _
        $region44: #{tpu_custom_call.1} parent=11 // pred_fallthru
          _
        // Predicated region
        $region45: #{tpu_custom_call.1} parent=11 // pred_check
          %p428 = pneg %p232
        $region46: #{tpu_custom_call.1} parent=11 // pred_check_branch
          %430 = sbr.rel (%p428) target = $region48
        $region47: #{tpu_custom_call.1} parent=11 // pred_region
          _
        $region48: #{tpu_custom_call.1} parent=11 // pred_fallthru
          _
      $region12: #{tpu_custom_call.1} parent=5 // pred_fallthru
        _
      %p431 = scmp.lt.s32.totalorder %s31, 2
      // Predicated region
      $region49: #{tpu_custom_call.1} parent=5 // pred_check
        %p432 = pneg %p431
      $region50: #{tpu_custom_call.1} parent=5 // pred_check_branch
        %434 = sbr.rel (%p432) target = $region52
      $region51: #{tpu_custom_call.1} parent=5 // pred_region
        // Predicated region
        $region53: #{tpu_custom_call.1} parent=51 // pred_check
          %p435 = pneg %p254
        $region54: #{tpu_custom_call.1} parent=51 // pred_check_branch
          %437 = sbr.rel (%p435) target = $region56
        $region55: #{tpu_custom_call.1} parent=51 // pred_region
          %s438 = sand.u32 %s244, 1
          %s439 = scalar_lea.sflag [#allocation14], %s438
          %s440 = sand.u32 %s244, 1
          %s441 = smul.addr %s440, 16
          %s442 = scalar_lea.vmem [#allocation13], %s441
          %s443 = sadd.s32 %s38, %s39
          %445 = vsyncadd %s439, 0
          %s446 = smul.addr %s443, 4
          %s447 = smul.addr %s446, 4
          %s448 = scalar_lea.hbm %s9, %s447
          %s449 = sshll.u32 %s448, 4
          %s450 = int_to_ptr.hbm [resolvable:$true] %s449
          %s451 = sshll.u32 %s442, 4
          %s452 = int_to_ptr.vmem [resolvable:$true] %s451
          %457 = dma.hbm_to_vmem [thread:$0]  %s450, 256, %s452, %s439, 64, 64, 4
        $region56: #{tpu_custom_call.1} parent=51 // pred_fallthru
          _
        // Predicated region
        $region57: #{tpu_custom_call.1} parent=51 // pred_check
          %p458 = pneg %p282
        $region58: #{tpu_custom_call.1} parent=51 // pred_check_branch
          %460 = sbr.rel (%p458) target = $region60
        $region59: #{tpu_custom_call.1} parent=51 // pred_region
          %s461 = sadd.s32 %s38, %s39
          %p462 = scmp.lt.s32.totalorder %s461, 1
          %s463 = scalar_select %p462, %s461, 1
          %s464 = scalar_lea.vmem %s10, %s463
          %s465 = sadd.s32 %s38, %s39
        $region60: #{tpu_custom_call.1} parent=51 // pred_fallthru
          _
      $region52: #{tpu_custom_call.1} parent=5 // pred_fallthru
        _
      %p466 = scmp.le.s32.totalorder 1, %s31
      %p467 = scmp.lt.s32.totalorder %s31, 3
      %p468 = pnand %p466, %p467
      %p469 = pneg %p468
      // Predicated region
      $region61: #{tpu_custom_call.1} parent=5 // pred_check
        _
      $region62: #{tpu_custom_call.1} parent=5 // pred_check_branch
        %471 = sbr.rel (%p468) target = $region64
      $region63: #{tpu_custom_call.1} parent=5 // pred_region
        %s472 = ssub.s32 %s31, 1
        // Predicated region
        $region65: #{tpu_custom_call.1} parent=63 // pred_check
          %p473 = pneg %p64
        $region66: #{tpu_custom_call.1} parent=63 // pred_check_branch
          %475 = sbr.rel (%p473) target = $region68
        $region67: #{tpu_custom_call.1} parent=63 // pred_region
          %477 = dma.done [#allocation5], 128
        $region68: #{tpu_custom_call.1} parent=63 // pred_fallthru
          _
        // Predicated region
        $region69: #{tpu_custom_call.1} parent=63 // pred_check
          %p478 = pneg %p85
        $region70: #{tpu_custom_call.1} parent=63 // pred_check_branch
          %480 = sbr.rel (%p478) target = $region72
        $region71: #{tpu_custom_call.1} parent=63 // pred_region
          %482 = dma.done [#allocation8], 256
        $region72: #{tpu_custom_call.1} parent=63 // pred_fallthru
          _
        // Predicated region
        $region73: #{tpu_custom_call.1} parent=63 // pred_check
          %p483 = pneg %p127
        $region74: #{tpu_custom_call.1} parent=63 // pred_check_branch
          %485 = sbr.rel (%p483) target = $region76
        $region75: #{tpu_custom_call.1} parent=63 // pred_region
          %487 = dma.done [#allocation8], 16
        $region76: #{tpu_custom_call.1} parent=63 // pred_fallthru
          _
        // Predicated region
        $region77: #{tpu_custom_call.1} parent=63 // pred_check
          %p488 = pneg %p148
        $region78: #{tpu_custom_call.1} parent=63 // pred_check_branch
          %490 = sbr.rel (%p488) target = $region80
        $region79: #{tpu_custom_call.1} parent=63 // pred_region
          %492 = dma.done [#allocation11], 16
        $region80: #{tpu_custom_call.1} parent=63 // pred_fallthru
          _
        // Predicated region
        $region81: #{tpu_custom_call.1} parent=63 // pred_check
          %p493 = pneg %p169
        $region82: #{tpu_custom_call.1} parent=63 // pred_check_branch
          %495 = sbr.rel (%p493) target = $region84
        $region83: #{tpu_custom_call.1} parent=63 // pred_region
          %497 = dma.done [#allocation11], 512
        $region84: #{tpu_custom_call.1} parent=63 // pred_fallthru
          _
        %s498 = sand.u32 %s247, 1
        %s499 = scalar_lea.sflag [#allocation14], %s498
        %s500 = sand.u32 %s247, 1
        %s501 = smul.addr %s500, 16
        %s502 = scalar_lea.vmem [#allocation13], %s501
        // Predicated region
        $region85: #{tpu_custom_call.1} parent=63 // pred_check
          %p503 = pneg %p260
        $region86: #{tpu_custom_call.1} parent=63 // pred_check_branch
          %505 = sbr.rel (%p503) target = $region88
        $region87: #{tpu_custom_call.1} parent=63 // pred_region
          %507 = dma.done %s499, 256
        $region88: #{tpu_custom_call.1} parent=63 // pred_fallthru
          _
        %p508 = pneg %p64
        %p509 = pneg %p61
        %p510 = pneg %p85
        %p511 = pneg %p82
        %p512 = pneg %p106
        %p513 = pneg %p103
        %p514 = pneg %p127
        %p515 = pneg %p124
        %p516 = pneg %p148
        %p517 = pneg %p145
        %p518 = pneg %p169
        %p519 = pneg %p166
        %p520 = pneg %p190
        %p521 = pneg %p187
        %p522 = pneg %p211
        %p523 = pneg %p208
        %p524 = pneg %p232
        %p525 = pneg %p229
        %s526 = sand.u32 %s247, 1
        %s527 = scalar_lea.sflag [#allocation14], %s526
        %s528 = sand.u32 %s247, 1
        %s529 = smul.addr %s528, 16
        %s530 = scalar_lea.vmem [#allocation13], %s529
        %p531 = pneg %p260
        %p532 = pneg %p257
        %s533 = sadd.s32 %s40, %s41
        %p534 = scmp.lt.s32.totalorder %s533, 1
        %s535 = scalar_select %p534, %s533, 1
        %s536 = scalar_lea.vmem %s10, %s535
        %p537 = pneg %p288
        %p538 = pneg %p285
        %p539 = pneg %p314
        %p540 = pneg %p311
        %s541 = sand.u32 %s301, 1
        %s542 = scalar_lea.sflag [#allocation6], %s541
        %s543 = sand.u32 %s301, 1
        %s544 = smul.addr %s543, 8
        %s545 = scalar_lea.vmem [#allocation15], %s544
        %p546 = pneg %p340
        %p547 = pneg %p337
        %s548 = sand.u32 %s327, 1
        %s549 = scalar_lea.sflag [#allocation17], %s548
        %s550 = sand.u32 %s327, 1
        %s551 = smul.addr %s550, 8
        %s552 = scalar_lea.vmem [#allocation16], %s551
        %s553 = sadd.s32 %s40, %s41
        %s554 = sadd.s32 %s40, %s41
        %p555 = scmp.lt.s32.totalorder %s554, 1
        %s556 = scalar_select %p555, %s554, 1
        %s557 = scalar_lea.vmem %s10, %s556
        %s558 = sadd.s32 %s40, %s41
        %p560 = scmp.eq.s32.totalorder %s41, 0
        // Predicated region
        $region89: #{tpu_custom_call.1} parent=63 // pred_check
          %p561 = pneg %p560
        $region90: #{tpu_custom_call.1} parent=63 // pred_check_branch
          %563 = sbr.rel (%p561) target = $region92
        $region91: #{tpu_custom_call.1} parent=63 // pred_region
          %v564 = vlaneseq
          %v565 = vshrl.u32 %v564, 7
          %vm566 = vcmp.lt.s32.totalorder %v565, 4
          %v567 = vld [vmem:[#allocation4] sm:$0xff]
          %v568 = vld [vmem:[#allocation7] sm:$0xff]
          %v569 = vld [vmem:[#allocation7 + $0x8] sm:$0xff]
          %v570 = vld [vmem:[%s2] sm:$0x1]
          %v572 = vperm.slane %v570, 0
          %vm574 = vcmask 130048
          %v576 = vsel %vm574, %v567, 0
          %578 = vmatpush.msra.mxu0 0.0
          %579 = vmatpush.msra.mxu0 0.0
          %580 = vmatpush.msra.mxu0 0.0
          %581 = vmatpush.msra.mxu0 0.0
          %582 = vmatpush.msra.mxu0 0.0
          %583 = vmatpush.msra.mxu0 0.0
          %584 = vmatpush.msra.mxu0 0.0
          %585 = vmatpush.msra.mxu0 0.0
          %586 = vmatpush.msra.mxu0 0.0
          %587 = vmatpush.msra.mxu0 0.0
          %588 = vmatpush.msra.mxu0 0.0
          %589 = vmatpush.msra.mxu0 0.0
          %590 = vmatpush.msra.mxu0 0.0
          %591 = vmatpush.msra.mxu0 0.0
          %592 = vmatpush.msra.mxu0 %v569
          %593 = vmatpush.msra.mxu0 %v568
          %594 = vmatmul.f32.gmra.mxu0 %v576
          %v595 = vpop.f32.mrf.mxu0
          %v596 = vadd.f32 %v572, %v595
          %597 = vdwg.mxu0
          %v598 = vld [vmem:[#allocation9] sm:$0x1]
          %v599 = vld [vmem:[#allocation10] sm:$0x1]
          %v600 = vsel %vm566, 1, 0
          %vm601 = vcmp.eq.s32.totalorder %v600, 1
          %v602 = vsel %vm601, %v596, 0.0
          %vm603 = vcmask 261120
          %v604 = vsel %vm603, %v602, 0.0
          %v605 = vrot.slane %v604, 4
          %v606 = vadd.f32 %v604, %v605
          %v607 = vrot.slane %v606, 2
          %v608 = vadd.f32 %v606, %v607
          %v609 = vrot.slane %v608, 1
          %v610 = vadd.f32 %v608, %v609
          %v611 = vmul.f32 %v610, 0.25
          %v612 = vsub.f32 %v596, %v611
          %v613 = vsel %vm601, %v612, 0.0
          %v614 = vmul.f32 %v613, %v613
          %v615 = vsel %vm603, %v614, 0.0
          %v616 = vrot.slane %v615, 4
          %v617 = vadd.f32 %v615, %v616
          %v618 = vrot.slane %v617, 2
          %v619 = vadd.f32 %v617, %v618
          %v620 = vrot.slane %v619, 1
          %v621 = vadd.f32 %v619, %v620
          %v622 = vmul.f32 %v621, 0.25
          %v623 = vadd.f32 %v622, 1e-05
          %v624 = vrsqrt.pop %v623
          %v625 = vmul.f32 %v624, %v623
          %v626 = vmul.f32 %v625, %v624
          %v627 = vmul.f32 0.5, %v626
          %v628 = vsub.f32 1.5, %v627
          %v629 = vmul.f32 %v624, %v628
          %vm630 = vweird.f32 %v623
          %vm631 = vweird.f32 %v624
          %vm632 = vmor %vm630, %vm631
          %v633 = vsel %vm632, %v624, %v629
          %v634 = vmul.f32 %v633, %v598
          %v635 = vmul.f32 %v611, %v634
          %v636 = vsub.f32 %v599, %v635
          %v637 = vperm.slane %v634, 0
          %v638 = vmul.f32 %v596, %v637
          %v640 = vperm.slane %v636, 0
          %v642 = vadd.f32 %v638, %v640
          %v643 = vmax.f32 %v642, 0.0
          %v644 = vld [vmem:[#allocation12] sm:$0xff]
          %v645 = vld [vmem:[#allocation12 + $0x8] sm:$0xff]
          %v646 = vld [vmem:[#allocation12 + $0x10] sm:$0xff]
          %v647 = vld [vmem:[#allocation12 + $0x18] sm:$0xff]
          %v648 = vld [vmem:[%s6] sm:$0x1]
          %v650 = vperm.slane %v648, 0
          %v653 = vsel %vm603, %v643, 0
          %655 = vmatpush.msra.mxu0 0.0
          %656 = vmatpush.msra.mxu0 0.0
          %657 = vmatpush.msra.mxu0 0.0
          %658 = vmatpush.msra.mxu0 0.0
          %659 = vmatpush.msra.mxu0 0.0
          %660 = vmatpush.msra.mxu0 0.0
          %661 = vmatpush.msra.mxu0 0.0
          %662 = vmatpush.msra.mxu0 0.0
          %663 = vmatpush.msra.mxu0 0.0
          %664 = vmatpush.msra.mxu0 0.0
          %665 = vmatpush.msra.mxu0 0.0
          %666 = vmatpush.msra.mxu0 0.0
          %667 = vmatpush.msra.mxu0 %v647
          %668 = vmatpush.msra.mxu0 %v646
          %669 = vmatpush.msra.mxu0 %v645
          %670 = vmatpush.msra.mxu0 %v644
          %671 = vmatmul.f32.gmra.mxu0 %v653
          %v672 = vpop.f32.mrf.mxu0
          %v673 = vadd.f32 %v650, %v672
          %674 = vdwg.mxu0
          %v675 = vld [vmem:[%s7] sm:$0x1]
          %v676 = vld [vmem:[%s8] sm:$0x1]
          %v677 = vsel %vm601, %v673, 0.0
          %v678 = vsel %vm603, %v677, 0.0
          %v679 = vrot.slane %v678, 4
          %v680 = vadd.f32 %v678, %v679
          %v681 = vrot.slane %v680, 2
          %v682 = vadd.f32 %v680, %v681
          %v683 = vrot.slane %v682, 1
          %v684 = vadd.f32 %v682, %v683
          %v685 = vmul.f32 %v684, 0.25
          %v686 = vsub.f32 %v673, %v685
          %v687 = vsel %vm601, %v686, 0.0
          %v688 = vmul.f32 %v687, %v687
          %v689 = vsel %vm603, %v688, 0.0
          %v690 = vrot.slane %v689, 4
          %v691 = vadd.f32 %v689, %v690
          %v692 = vrot.slane %v691, 2
          %v693 = vadd.f32 %v691, %v692
          %v694 = vrot.slane %v693, 1
          %v695 = vadd.f32 %v693, %v694
          %v696 = vmul.f32 %v695, 0.25
          %v697 = vadd.f32 %v696, 1e-05
          %v698 = vrsqrt.pop %v697
          %v699 = vmul.f32 %v698, %v697
          %v700 = vmul.f32 %v699, %v698
          %v701 = vmul.f32 0.5, %v700
          %v702 = vsub.f32 1.5, %v701
          %v703 = vmul.f32 %v698, %v702
          %vm704 = vweird.f32 %v697
          %vm705 = vweird.f32 %v698
          %vm706 = vmor %vm704, %vm705
          %v707 = vsel %vm706, %v698, %v703
          %v708 = vmul.f32 %v707, %v675
          %v709 = vmul.f32 %v685, %v708
          %v710 = vsub.f32 %v676, %v709
          %v711 = vperm.slane %v708, 0
          %v712 = vmul.f32 %v673, %v711
          %v714 = vperm.slane %v710, 0
          %v716 = vadd.f32 %v712, %v714
          %v717 = vmax.f32 %v716, 0.0
          %v718 = vpack.c.bf16 %v717, %v717
          %vm719 = vcmask 257024
          %720 = vst.msk [vmem:[#allocation2] sm:$0xf] %vm719, %v718
          %721 = vst [vmem:[%s545] sm:$0xff] -inf
          %722 = vst [vmem:[%s552] sm:$0xff] 0
          %vm723 = vcmask 7168
          %724 = vst.msk [vmem:[#allocation3] sm:$0xff] %vm723, -inf
        $region92: #{tpu_custom_call.1} parent=63 // pred_fallthru
          _
        %s725 = sadd.s32 %s40, %s41
        %s726 = smul.u32 %s725, 128
        %v727 = vlaneseq
        %v728 = vand.u32 %v727, 127
        %v729 = vld [vmem:[#allocation2] sm:$0xf]
        %v730 = vld [vmem:[%s502] sm:$0xf]
        %v731 = vld [vmem:[%s502 + $0x4] sm:$0xf]
        %v732 = vld [vmem:[%s502 + $0x8] sm:$0xf]
        %v733 = vld [vmem:[%s502 + $0xc] sm:$0xf]
        %v734 = vld [vmem:[%s557] sm:$0x1]
        %v736 = vperm.slane %v734, 0
        %v742 = vunpack.c.l.b16 %v730
        %v743 = vunpack.c.l.b16 %v731
        %v744 = vunpack.c.l.b16 %v732
        %v745 = vunpack.c.l.b16 %v733
        %v746 = vpack.c.b16 %v743, %v742
        %v747 = vpack.c.b16 %v745, %v744
        %vm750 = vcmask 261120
        %v752 = vsel %vm750, %v729, 0
        %754 = vmatpush.bf16.msra.mxu0 0
        %755 = vmatpush.bf16.msra.mxu0 0
        %756 = vmatpush.bf16.msra.mxu0 0
        %757 = vmatpush.bf16.msra.mxu0 0
        %758 = vmatpush.bf16.msra.mxu0 0
        %759 = vmatpush.bf16.msra.mxu0 0
        %760 = vmatpush.bf16.msra.mxu0 %v747
        %761 = vmatpush.bf16.msra.mxu0 %v746
        %762 = vmatmul.bf16.gmra.mxu0 %v752
        %v763 = vpop.f32.mrf.mxu0
        %v764 = vadd.f32 %v736, %v763
        %v765 = vpop.f32.mrf.mxu0
        %766 = vdwg.mxu0
        %v767 = vstv %s726
        %v768 = vadd.s32 %v728, %v767
        %769 = vmax.xlane.f32.xlu0 %v764
        %v770 = vpop.xlane.xlu0 %769
        %v771 = vld [vmem:[#allocation3] sm:$0xff]
        %vm772 = vcmp.gt.f32.partialorder %v770, %v771
        %v773 = vsel %vm772, 1.0, 0.0
        %vm774 = vcmask 7168
        %v775 = vsel %vm774, %v773, -inf
        %776 = vmax.xlane.f32.xlu0 %v775
        %v777 = vpop.xlane.xlu0 %776
        %v778 = vrot.slane %v777, 4
        %v779 = vmax.f32 %v777, %v778
        %v780 = vrot.slane %v779, 2
        %v781 = vmax.f32 %v779, %v780
        %v782 = vrot.slane %v781, 1
        %v783 = vmax.f32 %v781, %v782
        %s784 = vtos %v783
        %p785 = scmp.gt.f32.partialorder %s784, 0.0
        // Predicated region
        $region93: #{tpu_custom_call.1} parent=63 // pred_check
          %p786 = pneg %p785
        $region94: #{tpu_custom_call.1} parent=63 // pred_check_branch
          %788 = sbr.rel (%p786) target = $region96
        $region95: #{tpu_custom_call.1} parent=63 // pred_region
          %v789 = vld [vmem:[%s545] sm:$0xff]
          %v790 = vld [vmem:[%s552] sm:$0xff]
          %v791 = vmax.f32 %v789, %v764
          %792 = vmax.xlane.f32.xlu0 %v791
          %v793 = vpop.xlane.xlu0 %792
          %vm794 = vcmp.eq.f32.partialorder %v789, %v793
          %vm795 = vcmp.eq.f32.partialorder %v764, %v793
          %v796 = vsel %vm794, %v790, 2147483647
          %v797 = vsel %vm795, %v768, 2147483647
          %vm798 = vcmp.lt.s32.totalorder %v796, %v797
          %v799 = vsel %vm798, %v796, %v797
          %v800 = vand.u32 %v799, 65535
          %v801 = vshra.s32 %v799, 16
          %v802 = vcvt.s32.f32 %v800
          %v803 = vcvt.s32.f32 %v801
          %804 = vmin.xlane.f32.xlu0 %v803
          %v805 = vpop.xlane.xlu0 %804
          %vm806 = vcmp.eq.f32.partialorder %v803, %v805
          %v807 = vsel %vm806, %v802, inf
          %808 = vmin.xlane.f32.xlu0 %v807
          %v809 = vpop.xlane.xlu0 %808
          %v810 = vcvt.f32.s32 %v809
          %v811 = vcvt.f32.s32 %v805
          %v812 = vshll.u32 %v811, 16
          %v813 = vadd.s32 %v812, %v810
          %vm814 = vcmp.eq.s32.totalorder %v728, 0
          %v815 = vsel %vm814, %v793, -inf
          %v816 = vsel %vm814, %v813, 0
          %vm817 = vcmp.eq.s32.totalorder %v790, %v813
          %vm818 = vcmp.eq.s32.totalorder %v768, %v813
          %v819 = vsel %vm817, -inf, %v789
          %v820 = vsel %vm818, -inf, %v764
          %v821 = vmax.f32 %v819, %v820
          %822 = vmax.xlane.f32.xlu0 %v821
          %v823 = vpop.xlane.xlu0 %822
          %vm824 = vcmp.eq.f32.partialorder %v819, %v823
          %vm825 = vcmp.eq.f32.partialorder %v820, %v823
          %v826 = vsel %vm824, %v790, 2147483647
          %v827 = vsel %vm825, %v768, 2147483647
          %vm828 = vcmp.lt.s32.totalorder %v826, %v827
          %v829 = vsel %vm828, %v826, %v827
          %v830 = vand.u32 %v829, 65535
          %v831 = vshra.s32 %v829, 16
          %v832 = vcvt.s32.f32 %v830
          %v833 = vcvt.s32.f32 %v831
          %834 = vmin.xlane.f32.xlu0 %v833
          %v835 = vpop.xlane.xlu0 %834
          %vm836 = vcmp.eq.f32.partialorder %v833, %v835
          %v837 = vsel %vm836, %v832, inf
          %838 = vmin.xlane.f32.xlu0 %v837
          %v839 = vpop.xlane.xlu0 %838
          %v840 = vcvt.f32.s32 %v839
          %v841 = vcvt.f32.s32 %v835
          %v842 = vshll.u32 %v841, 16
          %v843 = vadd.s32 %v842, %v840
          %vm844 = vcmp.eq.s32.totalorder %v728, 1
          %v845 = vsel %vm844, %v823, %v815
          %v846 = vsel %vm844, %v843, %v816
          %vm847 = vcmp.eq.s32.totalorder %v790, %v843
          %vm848 = vcmp.eq.s32.totalorder %v768, %v843
          %v849 = vsel %vm847, -inf, %v819
          %v850 = vsel %vm848, -inf, %v820
          %v851 = vmax.f32 %v849, %v850
          %852 = vmax.xlane.f32.xlu0 %v851
          %v853 = vpop.xlane.xlu0 %852
          %vm854 = vcmp.eq.f32.partialorder %v849, %v853
          %vm855 = vcmp.eq.f32.partialorder %v850, %v853
          %v856 = vsel %vm854, %v790, 2147483647
          %v857 = vsel %vm855, %v768, 2147483647
          %vm858 = vcmp.lt.s32.totalorder %v856, %v857
          %v859 = vsel %vm858, %v856, %v857
          %v860 = vand.u32 %v859, 65535
          %v861 = vshra.s32 %v859, 16
          %v862 = vcvt.s32.f32 %v860
          %v863 = vcvt.s32.f32 %v861
          %864 = vmin.xlane.f32.xlu0 %v863
          %v865 = vpop.xlane.xlu0 %864
          %vm866 = vcmp.eq.f32.partialorder %v863, %v865
          %v867 = vsel %vm866, %v862, inf
          %868 = vmin.xlane.f32.xlu0 %v867
          %v869 = vpop.xlane.xlu0 %868
          %v870 = vcvt.f32.s32 %v869
          %v871 = vcvt.f32.s32 %v865
          %v872 = vshll.u32 %v871, 16
          %v873 = vadd.s32 %v872, %v870
          %vm874 = vcmp.eq.s32.totalorder %v728, 2
          %v875 = vsel %vm874, %v853, %v845
          %v876 = vsel %vm874, %v873, %v846
          %vm877 = vcmp.eq.s32.totalorder %v790, %v873
          %vm878 = vcmp.eq.s32.totalorder %v768, %v873
          %v879 = vsel %vm877, -inf, %v849
          %v880 = vsel %vm878, -inf, %v850
          %v881 = vmax.f32 %v879, %v880
          %882 = vmax.xlane.f32.xlu0 %v881
          %v883 = vpop.xlane.xlu0 %882
          %vm884 = vcmp.eq.f32.partialorder %v879, %v883
          %vm885 = vcmp.eq.f32.partialorder %v880, %v883
          %v886 = vsel %vm884, %v790, 2147483647
          %v887 = vsel %vm885, %v768, 2147483647
          %vm888 = vcmp.lt.s32.totalorder %v886, %v887
          %v889 = vsel %vm888, %v886, %v887
          %v890 = vand.u32 %v889, 65535
          %v891 = vshra.s32 %v889, 16
          %v892 = vcvt.s32.f32 %v890
          %v893 = vcvt.s32.f32 %v891
          %894 = vmin.xlane.f32.xlu0 %v893
          %v895 = vpop.xlane.xlu0 %894
          %vm896 = vcmp.eq.f32.partialorder %v893, %v895
          %v897 = vsel %vm896, %v892, inf
          %898 = vmin.xlane.f32.xlu0 %v897
          %v899 = vpop.xlane.xlu0 %898
          %v900 = vcvt.f32.s32 %v899
          %v901 = vcvt.f32.s32 %v895
          %v902 = vshll.u32 %v901, 16
          %v903 = vadd.s32 %v902, %v900
          %vm904 = vcmp.eq.s32.totalorder %v728, 3
          %v905 = vsel %vm904, %v883, %v875
          %v906 = vsel %vm904, %v903, %v876
          %vm907 = vcmp.eq.s32.totalorder %v790, %v903
          %vm908 = vcmp.eq.s32.totalorder %v768, %v903
          %v909 = vsel %vm907, -inf, %v879
          %v910 = vsel %vm908, -inf, %v880
          %v911 = vmax.f32 %v909, %v910
          %912 = vmax.xlane.f32.xlu0 %v911
          %v913 = vpop.xlane.xlu0 %912
          %vm914 = vcmp.eq.f32.partialorder %v909, %v913
          %vm915 = vcmp.eq.f32.partialorder %v910, %v913
          %v916 = vsel %vm914, %v790, 2147483647
          %v917 = vsel %vm915, %v768, 2147483647
          %vm918 = vcmp.lt.s32.totalorder %v916, %v917
          %v919 = vsel %vm918, %v916, %v917
          %v920 = vand.u32 %v919, 65535
          %v921 = vshra.s32 %v919, 16
          %v922 = vcvt.s32.f32 %v920
          %v923 = vcvt.s32.f32 %v921
          %924 = vmin.xlane.f32.xlu0 %v923
          %v925 = vpop.xlane.xlu0 %924
          %vm926 = vcmp.eq.f32.partialorder %v923, %v925
          %v927 = vsel %vm926, %v922, inf
          %928 = vmin.xlane.f32.xlu0 %v927
          %v929 = vpop.xlane.xlu0 %928
          %v930 = vcvt.f32.s32 %v929
          %v931 = vcvt.f32.s32 %v925
          %v932 = vshll.u32 %v931, 16
          %v933 = vadd.s32 %v932, %v930
          %vm934 = vcmp.eq.s32.totalorder %v728, 4
          %v935 = vsel %vm934, %v913, %v905
          %v936 = vsel %vm934, %v933, %v906
          %vm937 = vcmp.eq.s32.totalorder %v790, %v933
          %vm938 = vcmp.eq.s32.totalorder %v768, %v933
          %v939 = vsel %vm937, -inf, %v909
          %v940 = vsel %vm938, -inf, %v910
          %v941 = vmax.f32 %v939, %v940
          %942 = vmax.xlane.f32.xlu0 %v941
          %v943 = vpop.xlane.xlu0 %942
          %vm944 = vcmp.eq.f32.partialorder %v939, %v943
          %vm945 = vcmp.eq.f32.partialorder %v940, %v943
          %v946 = vsel %vm944, %v790, 2147483647
          %v947 = vsel %vm945, %v768, 2147483647
          %vm948 = vcmp.lt.s32.totalorder %v946, %v947
          %v949 = vsel %vm948, %v946, %v947
          %v950 = vand.u32 %v949, 65535
          %v951 = vshra.s32 %v949, 16
          %v952 = vcvt.s32.f32 %v950
          %v953 = vcvt.s32.f32 %v951
          %954 = vmin.xlane.f32.xlu0 %v953
          %v955 = vpop.xlane.xlu0 %954
          %vm956 = vcmp.eq.f32.partialorder %v953, %v955
          %v957 = vsel %vm956, %v952, inf
          %958 = vmin.xlane.f32.xlu0 %v957
          %v959 = vpop.xlane.xlu0 %958
          %v960 = vcvt.f32.s32 %v959
          %v961 = vcvt.f32.s32 %v955
          %v962 = vshll.u32 %v961, 16
          %v963 = vadd.s32 %v962, %v960
          %vm964 = vcmp.eq.s32.totalorder %v728, 5
          %v965 = vsel %vm964, %v943, %v935
          %v966 = vsel %vm964, %v963, %v936
          %vm967 = vcmp.eq.s32.totalorder %v790, %v963
          %vm968 = vcmp.eq.s32.totalorder %v768, %v963
          %v969 = vsel %vm967, -inf, %v939
          %v970 = vsel %vm968, -inf, %v940
          %v971 = vmax.f32 %v969, %v970
          %972 = vmax.xlane.f32.xlu0 %v971
          %v973 = vpop.xlane.xlu0 %972
          %vm974 = vcmp.eq.f32.partialorder %v969, %v973
          %vm975 = vcmp.eq.f32.partialorder %v970, %v973
          %v976 = vsel %vm974, %v790, 2147483647
          %v977 = vsel %vm975, %v768, 2147483647
          %vm978 = vcmp.lt.s32.totalorder %v976, %v977
          %v979 = vsel %vm978, %v976, %v977
          %v980 = vand.u32 %v979, 65535
          %v981 = vshra.s32 %v979, 16
          %v982 = vcvt.s32.f32 %v980
          %v983 = vcvt.s32.f32 %v981
          %984 = vmin.xlane.f32.xlu0 %v983
          %v985 = vpop.xlane.xlu0 %984
          %vm986 = vcmp.eq.f32.partialorder %v983, %v985
          %v987 = vsel %vm986, %v982, inf
          %988 = vmin.xlane.f32.xlu0 %v987
          %v989 = vpop.xlane.xlu0 %988
          %v990 = vcvt.f32.s32 %v989
          %v991 = vcvt.f32.s32 %v985
          %v992 = vshll.u32 %v991, 16
          %v993 = vadd.s32 %v992, %v990
          %vm994 = vcmp.eq.s32.totalorder %v728, 6
          %v995 = vsel %vm994, %v973, %v965
          %v996 = vsel %vm994, %v993, %v966
          %vm997 = vcmp.eq.s32.totalorder %v790, %v993
          %vm998 = vcmp.eq.s32.totalorder %v768, %v993
          %v999 = vsel %vm997, -inf, %v969
          %v1000 = vsel %vm998, -inf, %v970
          %v1001 = vmax.f32 %v999, %v1000
          %1002 = vmax.xlane.f32.xlu0 %v1001
          %v1003 = vpop.xlane.xlu0 %1002
          %vm1004 = vcmp.eq.f32.partialorder %v999, %v1003
          %vm1005 = vcmp.eq.f32.partialorder %v1000, %v1003
          %v1006 = vsel %vm1004, %v790, 2147483647
          %v1007 = vsel %vm1005, %v768, 2147483647
          %vm1008 = vcmp.lt.s32.totalorder %v1006, %v1007
          %v1009 = vsel %vm1008, %v1006, %v1007
          %v1010 = vand.u32 %v1009, 65535
          %v1011 = vshra.s32 %v1009, 16
          %v1012 = vcvt.s32.f32 %v1010
          %v1013 = vcvt.s32.f32 %v1011
          %1014 = vmin.xlane.f32.xlu0 %v1013
          %v1015 = vpop.xlane.xlu0 %1014
          %vm1016 = vcmp.eq.f32.partialorder %v1013, %v1015
          %v1017 = vsel %vm1016, %v1012, inf
          %1018 = vmin.xlane.f32.xlu0 %v1017
          %v1019 = vpop.xlane.xlu0 %1018
          %v1020 = vcvt.f32.s32 %v1019
          %v1021 = vcvt.f32.s32 %v1015
          %v1022 = vshll.u32 %v1021, 16
          %v1023 = vadd.s32 %v1022, %v1020
          %vm1024 = vcmp.eq.s32.totalorder %v728, 7
          %v1025 = vsel %vm1024, %v1003, %v995
          %v1026 = vsel %vm1024, %v1023, %v996
          %1027 = vst [vmem:[%s545] sm:$0xff] %v1025
          %1028 = vst [vmem:[%s552] sm:$0xff] %v1026
          %1029 = vst.msk [vmem:[#allocation3] sm:$0xff] %vm774, %v1003
        $region96: #{tpu_custom_call.1} parent=63 // pred_fallthru
          _
        %s1030 = sand.u32 %s301, 1
        %s1031 = scalar_lea.sflag [#allocation6], %s1030
        %s1032 = sand.u32 %s301, 1
        %s1033 = smul.addr %s1032, 8
        %s1034 = scalar_lea.vmem [#allocation15], %s1033
        %s1035 = sand.u32 %s327, 1
        %s1036 = scalar_lea.sflag [#allocation17], %s1035
        %s1037 = sand.u32 %s327, 1
        %s1038 = smul.addr %s1037, 8
        %s1039 = scalar_lea.vmem [#allocation16], %s1038
        // Predicated region
        $region97: #{tpu_custom_call.1} parent=63 // pred_check
          %p1040 = pneg %p311
        $region98: #{tpu_custom_call.1} parent=63 // pred_check_branch
          %1042 = sbr.rel (%p1040) target = $region100
        $region99: #{tpu_custom_call.1} parent=63 // pred_region
          %1044 = vsyncadd %s1031, 0
          %s1045 = smul.addr %s40, 8
          %s1046 = scalar_lea.hbm %s11, %s1045
          %s1048 = sshll.u32 %s1034, 4
          %s1049 = int_to_ptr.vmem [resolvable:$true] %s1048
          %s1050 = sshll.u32 %s1046, 4
          %s1051 = int_to_ptr.hbm [resolvable:$true] %s1050
          %1053 = dma.vmem_to_hbm [thread:$0]  %s1049, 128, %s1051, %s1031
        $region100: #{tpu_custom_call.1} parent=63 // pred_fallthru
          _
        // Predicated region
        $region101: #{tpu_custom_call.1} parent=63 // pred_check
          %p1054 = pneg %p337
        $region102: #{tpu_custom_call.1} parent=63 // pred_check_branch
          %1056 = sbr.rel (%p1054) target = $region104
        $region103: #{tpu_custom_call.1} parent=63 // pred_region
          %1058 = vsyncadd %s1036, 0
          %s1059 = smul.addr %s40, 8
          %s1060 = scalar_lea.hbm %s12, %s1059
          %s1062 = sshll.u32 %s1039, 4
          %s1063 = int_to_ptr.vmem [resolvable:$true] %s1062
          %s1064 = sshll.u32 %s1060, 4
          %s1065 = int_to_ptr.hbm [resolvable:$true] %s1064
          %1067 = dma.vmem_to_hbm [thread:$0]  %s1063, 128, %s1065, %s1036
        $region104: #{tpu_custom_call.1} parent=63 // pred_fallthru
          _
      $region64: #{tpu_custom_call.1} parent=5 // pred_fallthru
        _
      %p1068 = scmp.le.s32.totalorder 2, %s31
      // Predicated region
      $region105: #{tpu_custom_call.1} parent=5 // pred_check
        %p1069 = pneg %p1068
      $region106: #{tpu_custom_call.1} parent=5 // pred_check_branch
        %1071 = sbr.rel (%p1069) target = $region108
      $region107: #{tpu_custom_call.1} parent=5 // pred_region
        %s1072 = ssub.s32 %s31, 2
        // Predicated region
        $region109: #{tpu_custom_call.1} parent=107 // pred_check
          %p1073 = pneg %p317
        $region110: #{tpu_custom_call.1} parent=107 // pred_check_branch
          %1075 = sbr.rel (%p1073) target = $region112
        $region111: #{tpu_custom_call.1} parent=107 // pred_region
          %s1076 = sand.u32 %s302, 1
          %s1077 = scalar_lea.sflag [#allocation6], %s1076
          %s1078 = sand.u32 %s302, 1
          %s1079 = smul.addr %s1078, 8
          %s1080 = scalar_lea.vmem [#allocation15], %s1079
          %1082 = dma.done %s1077, 128
        $region112: #{tpu_custom_call.1} parent=107 // pred_fallthru
          _
        // Predicated region
        $region113: #{tpu_custom_call.1} parent=107 // pred_check
          %p1083 = pneg %p343
        $region114: #{tpu_custom_call.1} parent=107 // pred_check_branch
          %1085 = sbr.rel (%p1083) target = $region116
        $region115: #{tpu_custom_call.1} parent=107 // pred_region
          %s1086 = sand.u32 %s328, 1
          %s1087 = scalar_lea.sflag [#allocation17], %s1086
          %s1088 = sand.u32 %s328, 1
          %s1089 = smul.addr %s1088, 8
          %s1090 = scalar_lea.vmem [#allocation16], %s1089
          %1092 = dma.done %s1087, 128
        $region116: #{tpu_custom_call.1} parent=107 // pred_fallthru
          _
      $region108: #{tpu_custom_call.1} parent=5 // pred_fallthru
        _
    $region6: #{tpu_custom_call.1} parent=1 // loop_footer
      %s35 = sadd.s32 1, %s31
    $region7: #{tpu_custom_call.1} parent=1 // loop_footer_branch
      %30 = sbr.rel target = $region3
    $region8: #{tpu_custom_call.1} parent=1 // loop_exit
      _
    %1093 = vsyncpa [#allocation5], 1
    %s1094 = scalar_lea.sflag [#allocation5], 1
    %1095 = vsyncpa %s1094, 1
    %1096 = vsyncpa [#allocation8], 1
    %1097 = vsyncpa [#allocation11], 1
    %1098 = vsyncpa [#allocation14], 1
    %s1099 = scalar_lea.sflag [#allocation14], 1
    %1100 = vsyncpa %s1099, 1
    %1101 = vsyncpa [#allocation6], 1
    %s1102 = scalar_lea.sflag [#allocation6], 1
    %1103 = vsyncpa %s1102, 1
    %1104 = vsyncpa [#allocation17], 1
    %s1105 = scalar_lea.sflag [#allocation17], 1
    %1106 = vsyncpa %s1105, 1

</llo_original>
